<compile_context>
chip_gen: v5e
topology: v5e:2x2
jax: 0.10.0
libtpu: 0.0.40
codegen_flags: <defaults>
</compile_context>

<pallas_src>
import functools

import jax
import jax.numpy as jnp
from jax.experimental import pallas as pl
from jax.experimental.pallas import tpu as pltpu


# ----------------------------------------------------------------------------
# Kernel A: conv (single im2col matmul) + 2x2 maxpool + bias + ReLU.
#   patches layout: (T, 4, B*64, 25); axis 1 enumerates the 4 positions inside
#   each 2x2 pool window, rows are (b * 64 + pool_h*8 + pool_w).
# ----------------------------------------------------------------------------
def conv_pool_kernel(p_ref, cw_ref, cb_ref, o_ref):
    p = p_ref[0]                                   # (4, BP, 25) bf16
    win, bp, k = p.shape
    # Merge the window axis into the row axis: layout-free leading-dim merge.
    p2 = p.reshape(win * bp, k)                    # (4*BP, 25)
    y = jnp.dot(p2, cw_ref[0], preferred_element_type=jnp.float32)  # (4*BP, 16)
    y = y.reshape(win, bp, y.shape[-1])            # (4, BP, 16) leading split
    pooled = jnp.max(y, axis=0)                    # MaxPool2d(2,2)
    pooled = jnp.maximum(pooled + cb_ref[0], 0.0)  # bias + ReLU after pool (exact)
    o_ref[0] = pooled.astype(o_ref.dtype)          # (BP, 16)


# ----------------------------------------------------------------------------
# Kernel B: TimeDistributed dense1(1024->64)+ReLU, dense2(64->64)+ReLU.
#   (Dropout(0.5) after dense1 -> identity in eval mode.)
# ----------------------------------------------------------------------------
def dense_kernel(f_ref, w1_ref, b1_ref, w2_ref, b2_ref, o_ref):
    x = f_ref[0]                                   # (B, 1024) bf16
    h1 = jnp.dot(x, w1_ref[0], preferred_element_type=jnp.float32) + b1_ref[0]
    h1 = jnp.maximum(h1, 0.0)
    h2 = jnp.dot(h1.astype(w2_ref.dtype), w2_ref[0],
                 preferred_element_type=jnp.float32) + b2_ref[0]
    h2 = jnp.maximum(h2, 0.0)                      # (B, 64)
    o_ref[0] = h2.astype(o_ref.dtype)


# ----------------------------------------------------------------------------
# Kernel C: GRU (hidden 128, gate order r/z/n) over all T steps + classifier.
#   Single invocation: all weights + (T, B, 64) features live in VMEM once;
#   the hidden state is carried in registers across the unrolled time loop.
# ----------------------------------------------------------------------------
def gru_head_kernel(f_ref, wih_ref, whh_ref, bih_ref, bhh_ref,
                    w3_ref, b3_ref, o_ref):
    T, B, _ = f_ref.shape
    H = 128
    wih = wih_ref[...]                             # (64, 384)
    whh = whh_ref[...]                             # (128, 384)
    bih = bih_ref[...]                             # (1, 384)
    bhh = bhh_ref[...]                             # (1, 384)

    h = jnp.zeros((B, H), jnp.float32)
    for t in range(T):                             # T is small & static
        x = f_ref[t]                               # (B, 64) f32
        gi = jnp.dot(x, wih, preferred_element_type=jnp.float32) + bih
        gh = jnp.dot(h, whh, preferred_element_type=jnp.float32) + bhh
        r = jax.nn.sigmoid(gi[:, :H] + gh[:, :H])
        z = jax.nn.sigmoid(gi[:, H:2 * H] + gh[:, H:2 * H])
        n = jnp.tanh(gi[:, 2 * H:] + r * gh[:, 2 * H:])
        h = (1.0 - z) * n + z * h

    # F.dropout(0.5) treated as identity; final classifier head.
    out = jnp.dot(h, w3_ref[...], preferred_element_type=jnp.float32) + b3_ref[...]
    o_ref[...] = out.astype(o_ref.dtype)


# ----------------------------------------------------------------------------
# Glue: im2col with the 4 positions of each 2x2 pool window as a separate
# leading axis -> pooling becomes a pure elementwise max in-kernel.
# ----------------------------------------------------------------------------
def im2col_windows(x):
    # x: (B, T, 1, H, W) -> (T, 4, B*PH*PW, 25)
    B, T, _, H, W = x.shape
    OH, OW = H - 4, W - 4
    cols = jnp.stack(
        [x[:, :, 0, kh:kh + OH, kw:kw + OW] for kh in range(5) for kw in range(5)],
        axis=-1)                                   # (B, T, OH, OW, 25), k = kh*5+kw
    p = cols.reshape(B, T, OH // 2, 2, OW // 2, 2, 25)
    p = p.transpose(1, 3, 5, 0, 2, 4, 6)           # (T, dy, dx, B, ph, pw, 25)
    return p.reshape(T, 4, B * (OH // 2) * (OW // 2), 25)


def raw_widar3_forward(x, params, *, classes=6):
    B, T, _, H, W = x.shape
    PH, PW = (H - 4) // 2, (W - 4) // 2            # pooled spatial (8, 8)
    P = PH * PW                                    # 64 pooled positions
    feat = 16 * P                                  # 1024
    BP = B * P

    # bf16 im2col patches (halves the HBM traffic of the patch blow-up).
    patches = im2col_windows(x.astype(jnp.bfloat16))          # (T, 4, B*P, 25)

    conv_w = params["conv_w"].astype(jnp.bfloat16)             # (T, 25, 16)
    conv_b = params["conv_b"]                                  # (T, 1, 16) f32
    d1_w = params["d1_w"].astype(jnp.bfloat16)                 # (T, 1024, 64)
    d1_b = params["d1_b"]                                      # (T, 1, 64) f32
    d2_w = params["d2_w"].astype(jnp.bfloat16)                 # (T, 64, 64)
    d2_b = params["d2_b"]                                      # (T, 1, 64) f32

    # ---- Kernel A: conv + maxpool + bias + relu, one timestep per grid step ----
    pooled = pl.pallas_call(
        conv_pool_kernel,
        out_shape=jax.ShapeDtypeStruct((T, BP, 16), jnp.bfloat16),
        grid_spec=pltpu.PrefetchScalarGridSpec(
            num_scalar_prefetch=0,
            grid=(T,),
            in_specs=[
                pl.BlockSpec((1, 4, BP, 25), lambda t: (t, 0, 0, 0)),
                pl.BlockSpec((1, 25, 16), lambda t: (t, 0, 0)),
                pl.BlockSpec((1, 1, 16), lambda t: (t, 0, 0)),
            ],
            out_specs=pl.BlockSpec((1, BP, 16), lambda t: (t, 0, 0)),
        ),
        compiler_params=pltpu.CompilerParams(dimension_semantics=("parallel",)),
    )(patches, conv_w, conv_b)

    # flatten per timestep: rows are (b, pool_idx); feature order (pool_idx, c).
    flat = pooled.reshape(T, B, P, 16).reshape(T, B, feat)     # (T, B, 1024) bf16

    # ---- Kernel B: dense1 + relu, dense2 + relu (parallel over timesteps) ----
    feats = pl.pallas_call(
        dense_kernel,
        out_shape=jax.ShapeDtypeStruct((T, B, 64), jnp.float32),
        grid_spec=pltpu.PrefetchScalarGridSpec(
            num_scalar_prefetch=0,
            grid=(T,),
            in_specs=[
                pl.BlockSpec((1, B, feat), lambda t: (t, 0, 0)),
                pl.BlockSpec((1, feat, 64), lambda t: (t, 0, 0)),
                pl.BlockSpec((1, 1, 64), lambda t: (t, 0, 0)),
                pl.BlockSpec((1, 64, 64), lambda t: (t, 0, 0)),
                pl.BlockSpec((1, 1, 64), lambda t: (t, 0, 0)),
            ],
            out_specs=pl.BlockSpec((1, B, 64), lambda t: (t, 0, 0)),
        ),
        compiler_params=pltpu.CompilerParams(dimension_semantics=("parallel",)),
    )(flat, d1_w, d1_b, d2_w, d2_b)

    # ---- Kernel C: GRU over time + classifier, single invocation ----
    out = pl.pallas_call(
        gru_head_kernel,
        out_shape=jax.ShapeDtypeStruct((B, classes), jnp.float32),
    )(feats, params["gru_wih"], params["gru_whh"],
      params["gru_bih"], params["gru_bhh"], params["d3_w"], params["d3_b"])
    return out


# ----------------------------------------------------------------------------
# Deterministic synthetic parameters (PyTorch-conventional shapes, converted
# to the kernel layout in glue).
# ----------------------------------------------------------------------------
def init_params(key, *, T, classes=6, in_ch=1):
    ks = list(jax.random.split(key, 16))

    def u(k, shape, fan_in):
        b = 1.0 / jnp.sqrt(jnp.float32(fan_in))
        return jax.random.uniform(k, shape, jnp.float32, -b, b)

    # TimeDistributed conv: per-timestep Conv2d weight (16, in_ch, 5, 5)
    conv_w_pt = u(ks[0], (T, 16, in_ch, 5, 5), in_ch * 25)
    conv_b_pt = u(ks[1], (T, 16), in_ch * 25)
    conv_w = conv_w_pt.reshape(T, 16, 25).transpose(0, 2, 1)      # (T, 25, 16)
    conv_b = conv_b_pt.reshape(T, 1, 16)

    # TimeDistributed Linear(1024, 64): PyTorch weight (64, 1024) with input
    # flattened as (C=16, H=8, W=8). Kernel flatten order is (H*W, C);
    # permute columns so the math matches PyTorch's convention exactly.
    d1_w_pt = u(ks[2], (T, 64, 1024), 1024)
    d1_b_pt = u(ks[3], (T, 64), 1024)
    j = jnp.arange(1024)
    perm = (j % 16) * 64 + (j // 16)          # kernel column j -> pytorch column
    d1_w = d1_w_pt[:, :, perm].transpose(0, 2, 1)                  # (T, 1024, 64)
    d1_b = d1_b_pt.reshape(T, 1, 64)

    # TimeDistributed Linear(64, 64)
    d2_w = u(ks[4], (T, 64, 64), 64).transpose(0, 2, 1)            # (T, 64, 64)
    d2_b = u(ks[5], (T, 64), 64).reshape(T, 1, 64)

    # GRU(64 -> 128): gate order [r, z, n]
    gru_wih = u(ks[6], (384, 64), 128).T                           # (64, 384)
    gru_whh = u(ks[7], (384, 128), 128).T                          # (128, 384)
    gru_bih = u(ks[8], (384,), 128).reshape(1, 384)
    gru_bhh = u(ks[9], (384,), 128).reshape(1, 384)

    # dense3: Linear(128 -> classes)
    d3_w = u(ks[10], (classes, 128), 128).T                        # (128, classes)
    d3_b = u(ks[11], (classes,), 128).reshape(1, classes)

    return dict(conv_w=conv_w, conv_b=conv_b, d1_w=d1_w, d1_b=d1_b,
                d2_w=d2_w, d2_b=d2_b, gru_wih=gru_wih, gru_whh=gru_whh,
                gru_bih=gru_bih, gru_bhh=gru_bhh, d3_w=d3_w, d3_b=d3_b)


if __name__ == "__main__":
    B, T, IN_CH, H, W, CLASSES = 2, 4, 1, 20, 20, 6   # 20x20 required by Linear(1024,64)
    key = jax.random.PRNGKey(0)
    kx, kp = jax.random.split(key)
    x = jax.random.normal(kx, (B, T, IN_CH, H, W), dtype=jnp.float32)
    params = init_params(kp, T=T, classes=CLASSES, in_ch=IN_CH)

    fwd = jax.jit(functools.partial(raw_widar3_forward, classes=CLASSES))
    y = fwd(x, params)
    jax.block_until_ready(y)
    assert y.shape == (B, CLASSES) and y.dtype == jnp.float32
    print("KERNEL_OK")
</pallas_src>

<mosaic_0001>
module attributes {stable_mosaic.version = 11 : i64} {
  func.func @conv_pool_kernel(%arg0: i32, %arg1: memref<1x4x128x25xbf16, #tpu.memory_space<vmem>>, %arg2: memref<1x25x16xbf16, #tpu.memory_space<vmem>>, %arg3: memref<1x1x16xf32, #tpu.memory_space<vmem>>, %arg4: memref<1x128x16xbf16, #tpu.memory_space<vmem>>) attributes {dimension_semantics = [#tpu.dimension_semantics<parallel>], iteration_bounds = array<i64: 4>, scalar_prefetch = 0 : i64, scratch_operands = 0 : i64, tpu.core_type = #tpu.core_type<tc>, window_params = [{transform_indices = @transform_0, window_bounds = array<i64: 1, 4, 128, 25>}, {transform_indices = @transform_1, window_bounds = array<i64: 1, 25, 16>}, {transform_indices = @transform_2, window_bounds = array<i64: 1, 1, 16>}, {transform_indices = @transform_3, window_bounds = array<i64: 1, 128, 16>}]} {
    %c0 = arith.constant 0 : index
    %c0_0 = arith.constant 0 : index
    %c0_1 = arith.constant 0 : index
    %c0_2 = arith.constant 0 : index
    %0 = vector.load %arg1[%c0, %c0_0, %c0_1, %c0_2] : memref<1x4x128x25xbf16, #tpu.memory_space<vmem>>, vector<1x4x128x25xbf16>
    %1 = vector.shape_cast %0 : vector<1x4x128x25xbf16> to vector<4x128x25xbf16>
    %2 = vector.shape_cast %1 : vector<4x128x25xbf16> to vector<512x25xbf16>
    %c0_3 = arith.constant 0 : index
    %c0_4 = arith.constant 0 : index
    %c0_5 = arith.constant 0 : index
    %3 = vector.load %arg2[%c0_3, %c0_4, %c0_5] : memref<1x25x16xbf16, #tpu.memory_space<vmem>>, vector<1x25x16xbf16>
    %4 = vector.shape_cast %3 : vector<1x25x16xbf16> to vector<25x16xbf16>
    %cst = arith.constant dense<0.000000e+00> : vector<512x16xf32>
    %5 = tpu.matmul %2, %4, %cst {dimension_numbers = #tpu.dot_dimension_numbers<[1], [0], [0], [1], [0, 0, 1, 1], [], []>} : vector<512x25xbf16>, vector<25x16xbf16>, vector<512x16xf32> -> vector<512x16xf32>
    %6 = vector.shape_cast %5 : vector<512x16xf32> to vector<4x128x16xf32>
    %cst_6 = arith.constant dense<0xFF800000> : vector<128x16xf32>
    %7 = vector.multi_reduction <maximumf>, %6, %cst_6 [0] : vector<4x128x16xf32> to vector<128x16xf32>
    %c0_7 = arith.constant 0 : index
    %c0_8 = arith.constant 0 : index
    %c0_9 = arith.constant 0 : index
    %8 = vector.load %arg3[%c0_7, %c0_8, %c0_9] : memref<1x1x16xf32, #tpu.memory_space<vmem>>, vector<1x1x16xf32>
    %9 = vector.shape_cast %8 : vector<1x1x16xf32> to vector<1x16xf32>
    %10 = vector.broadcast %9 : vector<1x16xf32> to vector<128x16xf32>
    %11 = arith.addf %7, %10 : vector<128x16xf32>
    %cst_10 = arith.constant 0.000000e+00 : f32
    %12 = vector.broadcast %cst_10 : f32 to vector<128x16xf32>
    %13 = arith.maximumf %11, %12 : vector<128x16xf32>
    %14 = arith.truncf %13 : vector<128x16xf32> to vector<128x16xbf16>
    %c0_11 = arith.constant 0 : index
    %c0_12 = arith.constant 0 : index
    %c0_13 = arith.constant 0 : index
    %15 = vector.load %arg4[%c0_11, %c0_12, %c0_13] : memref<1x128x16xbf16, #tpu.memory_space<vmem>>, vector<1x128x16xbf16>
    %16 = vector.shape_cast %15 : vector<1x128x16xbf16> to vector<128x16xbf16>
    %17 = vector.shape_cast %14 : vector<128x16xbf16> to vector<1x128x16xbf16>
    tpu.vector_store %arg4[%c0_11, %c0_12, %c0_13], %17 {strides = array<i32>} : memref<1x128x16xbf16, #tpu.memory_space<vmem>>, vector<1x128x16xbf16>,
    return
  }
  func.func @transform_0(%arg0: i32) -> (i32, i32, i32, i32) {
    %c0_i32 = arith.constant 0 : i32
    %c0_i32_0 = arith.constant 0 : i32
    %c0_i32_1 = arith.constant 0 : i32
    %c0_i32_2 = arith.constant 0 : i32
    return %arg0, %c0_i32, %c0_i32_0, %c0_i32_1 : i32, i32, i32, i32
  }
  func.func @transform_1(%arg0: i32) -> (i32, i32, i32) {
    %c0_i32 = arith.constant 0 : i32
    %c0_i32_0 = arith.constant 0 : i32
    %c0_i32_1 = arith.constant 0 : i32
    return %arg0, %c0_i32, %c0_i32_0 : i32, i32, i32
  }
  func.func @transform_2(%arg0: i32) -> (i32, i32, i32) {
    %c0_i32 = arith.constant 0 : i32
    %c0_i32_0 = arith.constant 0 : i32
    %c0_i32_1 = arith.constant 0 : i32
    return %arg0, %c0_i32, %c0_i32_0 : i32, i32, i32
  }
  func.func @transform_3(%arg0: i32) -> (i32, i32, i32) {
    %c0_i32 = arith.constant 0 : i32
    %c0_i32_0 = arith.constant 0 : i32
    %c0_i32_1 = arith.constant 0 : i32
    return %arg0, %c0_i32, %c0_i32_0 : i32, i32, i32
  }
}

module attributes {stable_mosaic.version = 11 : i64} {
  func.func @dense_kernel(%arg0: i32, %arg1: memref<1x2x1024xbf16, #tpu.memory_space<vmem>>, %arg2: memref<1x1024x64xbf16, #tpu.memory_space<vmem>>, %arg3: memref<1x1x64xf32, #tpu.memory_space<vmem>>, %arg4: memref<1x64x64xbf16, #tpu.memory_space<vmem>>, %arg5: memref<1x1x64xf32, #tpu.memory_space<vmem>>, %arg6: memref<1x2x64xf32, #tpu.memory_space<vmem>>) attributes {dimension_semantics = [#tpu.dimension_semantics<parallel>], iteration_bounds = array<i64: 4>, scalar_prefetch = 0 : i64, scratch_operands = 0 : i64, tpu.core_type = #tpu.core_type<tc>, window_params = [{transform_indices = @transform_0, window_bounds = array<i64: 1, 2, 1024>}, {transform_indices = @transform_1, window_bounds = array<i64: 1, 1024, 64>}, {transform_indices = @transform_2, window_bounds = array<i64: 1, 1, 64>}, {transform_indices = @transform_3, window_bounds = array<i64: 1, 64, 64>}, {transform_indices = @transform_4, window_bounds = array<i64: 1, 1, 64>}, {transform_indices = @transform_5, window_bounds = array<i64: 1, 2, 64>}]} {
    %c0 = arith.constant 0 : index
    %c0_0 = arith.constant 0 : index
    %c0_1 = arith.constant 0 : index
    %0 = vector.load %arg1[%c0, %c0_0, %c0_1] : memref<1x2x1024xbf16, #tpu.memory_space<vmem>>, vector<1x2x1024xbf16>
    %1 = vector.shape_cast %0 : vector<1x2x1024xbf16> to vector<2x1024xbf16>
    %c0_2 = arith.constant 0 : index
    %c0_3 = arith.constant 0 : index
    %c0_4 = arith.constant 0 : index
    %2 = vector.load %arg2[%c0_2, %c0_3, %c0_4] : memref<1x1024x64xbf16, #tpu.memory_space<vmem>>, vector<1x1024x64xbf16>
    %3 = vector.shape_cast %2 : vector<1x1024x64xbf16> to vector<1024x64xbf16>
    %cst = arith.constant dense<0.000000e+00> : vector<2x64xf32>
    %4 = tpu.matmul %1, %3, %cst {dimension_numbers = #tpu.dot_dimension_numbers<[1], [0], [0], [1], [0, 0, 1, 1], [], []>} : vector<2x1024xbf16>, vector<1024x64xbf16>, vector<2x64xf32> -> vector<2x64xf32>
    %c0_5 = arith.constant 0 : index
    %c0_6 = arith.constant 0 : index
    %c0_7 = arith.constant 0 : index
    %5 = vector.load %arg3[%c0_5, %c0_6, %c0_7] : memref<1x1x64xf32, #tpu.memory_space<vmem>>, vector<1x1x64xf32>
    %6 = vector.shape_cast %5 : vector<1x1x64xf32> to vector<1x64xf32>
    %7 = vector.broadcast %6 : vector<1x64xf32> to vector<2x64xf32>
    %8 = arith.addf %4, %7 : vector<2x64xf32>
    %cst_8 = arith.constant 0.000000e+00 : f32
    %9 = vector.broadcast %cst_8 : f32 to vector<2x64xf32>
    %10 = arith.maximumf %8, %9 : vector<2x64xf32>
    %11 = arith.truncf %10 : vector<2x64xf32> to vector<2x64xbf16>
    %c0_9 = arith.constant 0 : index
    %c0_10 = arith.constant 0 : index
    %c0_11 = arith.constant 0 : index
    %12 = vector.load %arg4[%c0_9, %c0_10, %c0_11] : memref<1x64x64xbf16, #tpu.memory_space<vmem>>, vector<1x64x64xbf16>
    %13 = vector.shape_cast %12 : vector<1x64x64xbf16> to vector<64x64xbf16>
    %cst_12 = arith.constant dense<0.000000e+00> : vector<2x64xf32>
    %14 = tpu.matmul %11, %13, %cst_12 {dimension_numbers = #tpu.dot_dimension_numbers<[1], [0], [0], [1], [0, 0, 1, 1], [], []>} : vector<2x64xbf16>, vector<64x64xbf16>, vector<2x64xf32> -> vector<2x64xf32>
    %c0_13 = arith.constant 0 : index
    %c0_14 = arith.constant 0 : index
    %c0_15 = arith.constant 0 : index
    %15 = vector.load %arg5[%c0_13, %c0_14, %c0_15] : memref<1x1x64xf32, #tpu.memory_space<vmem>>, vector<1x1x64xf32>
    %16 = vector.shape_cast %15 : vector<1x1x64xf32> to vector<1x64xf32>
    %17 = vector.broadcast %16 : vector<1x64xf32> to vector<2x64xf32>
    %18 = arith.addf %14, %17 : vector<2x64xf32>
    %cst_16 = arith.constant 0.000000e+00 : f32
    %19 = vector.broadcast %cst_16 : f32 to vector<2x64xf32>
    %20 = arith.maximumf %18, %19 : vector<2x64xf32>
    %c0_17 = arith.constant 0 : index
    %c0_18 = arith.constant 0 : index
    %c0_19 = arith.constant 0 : index
    %21 = vector.load %arg6[%c0_17, %c0_18, %c0_19] : memref<1x2x64xf32, #tpu.memory_space<vmem>>, vector<1x2x64xf32>
    %22 = vector.shape_cast %21 : vector<1x2x64xf32> to vector<2x64xf32>
    %23 = vector.shape_cast %20 : vector<2x64xf32> to vector<1x2x64xf32>
    tpu.vector_store %arg6[%c0_17, %c0_18, %c0_19], %23 {strides = array<i32>} : memref<1x2x64xf32, #tpu.memory_space<vmem>>, vector<1x2x64xf32>,
    return
  }
  func.func @transform_0(%arg0: i32) -> (i32, i32, i32) {
    %c0_i32 = arith.constant 0 : i32
    %c0_i32_0 = arith.constant 0 : i32
    %c0_i32_1 = arith.constant 0 : i32
    return %arg0, %c0_i32, %c0_i32_0 : i32, i32, i32
  }
  func.func @transform_1(%arg0: i32) -> (i32, i32, i32) {
    %c0_i32 = arith.constant 0 : i32
    %c0_i32_0 = arith.constant 0 : i32
    %c0_i32_1 = arith.constant 0 : i32
    return %arg0, %c0_i32, %c0_i32_0 : i32, i32, i32
  }
  func.func @transform_2(%arg0: i32) -> (i32, i32, i32) {
    %c0_i32 = arith.constant 0 : i32
    %c0_i32_0 = arith.constant 0 : i32
    %c0_i32_1 = arith.constant 0 : i32
    return %arg0, %c0_i32, %c0_i32_0 : i32, i32, i32
  }
  func.func @transform_3(%arg0: i32) -> (i32, i32, i32) {
    %c0_i32 = arith.constant 0 : i32
    %c0_i32_0 = arith.constant 0 : i32
    %c0_i32_1 = arith.constant 0 : i32
    return %arg0, %c0_i32, %c0_i32_0 : i32, i32, i32
  }
  func.func @transform_4(%arg0: i32) -> (i32, i32, i32) {
    %c0_i32 = arith.constant 0 : i32
    %c0_i32_0 = arith.constant 0 : i32
    %c0_i32_1 = arith.constant 0 : i32
    return %arg0, %c0_i32, %c0_i32_0 : i32, i32, i32
  }
  func.func @transform_5(%arg0: i32) -> (i32, i32, i32) {
    %c0_i32 = arith.constant 0 : i32
    %c0_i32_0 = arith.constant 0 : i32
    %c0_i32_1 = arith.constant 0 : i32
    return %arg0, %c0_i32, %c0_i32_0 : i32, i32, i32
  }
}

module attributes {stable_mosaic.version = 11 : i64} {
  func.func @gru_head_kernel(%arg0: memref<4x2x64xf32, #tpu.memory_space<vmem>>, %arg1: memref<64x384xf32, #tpu.memory_space<vmem>>, %arg2: memref<128x384xf32, #tpu.memory_space<vmem>>, %arg3: memref<1x384xf32, #tpu.memory_space<vmem>>, %arg4: memref<1x384xf32, #tpu.memory_space<vmem>>, %arg5: memref<128x6xf32, #tpu.memory_space<vmem>>, %arg6: memref<1x6xf32, #tpu.memory_space<vmem>>, %arg7: memref<2x6xf32, #tpu.memory_space<vmem>>) attributes {dimension_semantics = [], scalar_prefetch = 0 : i64, scratch_operands = 0 : i64, tpu.core_type = #tpu.core_type<tc>} {
    %c0 = arith.constant 0 : index
    %c0_0 = arith.constant 0 : index
    %0 = vector.load %arg1[%c0, %c0_0] : memref<64x384xf32, #tpu.memory_space<vmem>>, vector<64x384xf32>
    %c0_1 = arith.constant 0 : index
    %c0_2 = arith.constant 0 : index
    %1 = vector.load %arg2[%c0_1, %c0_2] : memref<128x384xf32, #tpu.memory_space<vmem>>, vector<128x384xf32>
    %c0_3 = arith.constant 0 : index
    %c0_4 = arith.constant 0 : index
    %2 = vector.load %arg3[%c0_3, %c0_4] : memref<1x384xf32, #tpu.memory_space<vmem>>, vector<1x384xf32>
    %c0_5 = arith.constant 0 : index
    %c0_6 = arith.constant 0 : index
    %3 = vector.load %arg4[%c0_5, %c0_6] : memref<1x384xf32, #tpu.memory_space<vmem>>, vector<1x384xf32>
    %cst = arith.constant 0.000000e+00 : f32
    %4 = vector.broadcast %cst : f32 to vector<2x128xf32>
    %c0_7 = arith.constant 0 : index
    %c0_8 = arith.constant 0 : index
    %c0_9 = arith.constant 0 : index
    %5 = vector.load %arg0[%c0_7, %c0_8, %c0_9] : memref<4x2x64xf32, #tpu.memory_space<vmem>>, vector<1x2x64xf32>
    %6 = vector.shape_cast %5 : vector<1x2x64xf32> to vector<2x64xf32>
    %cst_10 = arith.constant dense<0.000000e+00> : vector<2x384xf32>
    %7 = tpu.matmul %6, %0, %cst_10 {dimension_numbers = #tpu.dot_dimension_numbers<[1], [0], [0], [1], [0, 0, 1, 1], [], []>} : vector<2x64xf32>, vector<64x384xf32>, vector<2x384xf32> -> vector<2x384xf32>
    %8 = vector.broadcast %2 : vector<1x384xf32> to vector<2x384xf32>
    %9 = arith.addf %7, %8 : vector<2x384xf32>
    %cst_11 = arith.constant dense<0.000000e+00> : vector<2x384xf32>
    %10 = tpu.matmul %4, %1, %cst_11 {dimension_numbers = #tpu.dot_dimension_numbers<[1], [0], [0], [1], [0, 0, 1, 1], [], []>} : vector<2x128xf32>, vector<128x384xf32>, vector<2x384xf32> -> vector<2x384xf32>
    %11 = vector.broadcast %3 : vector<1x384xf32> to vector<2x384xf32>
    %12 = arith.addf %10, %11 : vector<2x384xf32>
    %13 = vector.extract_strided_slice %9 {offsets = [0, 0], sizes = [2, 128], strides = [1, 1]} : vector<2x384xf32> to vector<2x128xf32>
    %14 = vector.extract_strided_slice %12 {offsets = [0, 0], sizes = [2, 128], strides = [1, 1]} : vector<2x384xf32> to vector<2x128xf32>
    %15 = arith.addf %13, %14 : vector<2x128xf32>
    %16 = arith.negf %15 : vector<2x128xf32>
    %17 = math.exp %16 : vector<2x128xf32>
    %cst_12 = arith.constant 1.000000e+00 : f32
    %18 = vector.broadcast %cst_12 : f32 to vector<2x128xf32>
    %19 = arith.addf %18, %17 : vector<2x128xf32>
    %20 = arith.divf %18, %19 : vector<2x128xf32>
    %21 = vector.extract_strided_slice %9 {offsets = [0, 128], sizes = [2, 128], strides = [1, 1]} : vector<2x384xf32> to vector<2x128xf32>
    %22 = vector.extract_strided_slice %12 {offsets = [0, 128], sizes = [2, 128], strides = [1, 1]} : vector<2x384xf32> to vector<2x128xf32>
    %23 = arith.addf %21, %22 : vector<2x128xf32>
    %24 = arith.negf %23 : vector<2x128xf32>
    %25 = math.exp %24 : vector<2x128xf32>
    %cst_13 = arith.constant 1.000000e+00 : f32
    %26 = vector.broadcast %cst_13 : f32 to vector<2x128xf32>
    %27 = arith.addf %26, %25 : vector<2x128xf32>
    %28 = arith.divf %26, %27 : vector<2x128xf32>
    %29 = vector.extract_strided_slice %9 {offsets = [0, 256], sizes = [2, 128], strides = [1, 1]} : vector<2x384xf32> to vector<2x128xf32>
    %30 = vector.extract_strided_slice %12 {offsets = [0, 256], sizes = [2, 128], strides = [1, 1]} : vector<2x384xf32> to vector<2x128xf32>
    %31 = arith.mulf %20, %30 : vector<2x128xf32>
    %32 = arith.addf %29, %31 : vector<2x128xf32>
    %33 = math.tanh %32 : vector<2x128xf32>
    %cst_14 = arith.constant 1.000000e+00 : f32
    %34 = vector.broadcast %cst_14 : f32 to vector<2x128xf32>
    %35 = arith.subf %34, %28 : vector<2x128xf32>
    %36 = arith.mulf %35, %33 : vector<2x128xf32>
    %37 = arith.mulf %28, %4 : vector<2x128xf32>
    %38 = arith.addf %36, %37 : vector<2x128xf32>
    %c1 = arith.constant 1 : index
    %c0_15 = arith.constant 0 : index
    %c0_16 = arith.constant 0 : index
    %39 = vector.load %arg0[%c1, %c0_15, %c0_16] : memref<4x2x64xf32, #tpu.memory_space<vmem>>, vector<1x2x64xf32>
    %40 = vector.shape_cast %39 : vector<1x2x64xf32> to vector<2x64xf32>
    %cst_17 = arith.constant dense<0.000000e+00> : vector<2x384xf32>
    %41 = tpu.matmul %40, %0, %cst_17 {dimension_numbers = #tpu.dot_dimension_numbers<[1], [0], [0], [1], [0, 0, 1, 1], [], []>} : vector<2x64xf32>, vector<64x384xf32>, vector<2x384xf32> -> vector<2x384xf32>
    %42 = vector.broadcast %2 : vector<1x384xf32> to vector<2x384xf32>
    %43 = arith.addf %41, %42 : vector<2x384xf32>
    %cst_18 = arith.constant dense<0.000000e+00> : vector<2x384xf32>
    %44 = tpu.matmul %38, %1, %cst_18 {dimension_numbers = #tpu.dot_dimension_numbers<[1], [0], [0], [1], [0, 0, 1, 1], [], []>} : vector<2x128xf32>, vector<128x384xf32>, vector<2x384xf32> -> vector<2x384xf32>
    %45 = vector.broadcast %3 : vector<1x384xf32> to vector<2x384xf32>
    %46 = arith.addf %44, %45 : vector<2x384xf32>
    %47 = vector.extract_strided_slice %43 {offsets = [0, 0], sizes = [2, 128], strides = [1, 1]} : vector<2x384xf32> to vector<2x128xf32>
    %48 = vector.extract_strided_slice %46 {offsets = [0, 0], sizes = [2, 128], strides = [1, 1]} : vector<2x384xf32> to vector<2x128xf32>
    %49 = arith.addf %47, %48 : vector<2x128xf32>
    %50 = arith.negf %49 : vector<2x128xf32>
    %51 = math.exp %50 : vector<2x128xf32>
    %cst_19 = arith.constant 1.000000e+00 : f32
    %52 = vector.broadcast %cst_19 : f32 to vector<2x128xf32>
    %53 = arith.addf %52, %51 : vector<2x128xf32>
    %54 = arith.divf %52, %53 : vector<2x128xf32>
    %55 = vector.extract_strided_slice %43 {offsets = [0, 128], sizes = [2, 128], strides = [1, 1]} : vector<2x384xf32> to vector<2x128xf32>
    %56 = vector.extract_strided_slice %46 {offsets = [0, 128], sizes = [2, 128], strides = [1, 1]} : vector<2x384xf32> to vector<2x128xf32>
    %57 = arith.addf %55, %56 : vector<2x128xf32>
    %58 = arith.negf %57 : vector<2x128xf32>
    %59 = math.exp %58 : vector<2x128xf32>
    %cst_20 = arith.constant 1.000000e+00 : f32
    %60 = vector.broadcast %cst_20 : f32 to vector<2x128xf32>
    %61 = arith.addf %60, %59 : vector<2x128xf32>
    %62 = arith.divf %60, %61 : vector<2x128xf32>
    %63 = vector.extract_strided_slice %43 {offsets = [0, 256], sizes = [2, 128], strides = [1, 1]} : vector<2x384xf32> to vector<2x128xf32>
    %64 = vector.extract_strided_slice %46 {offsets = [0, 256], sizes = [2, 128], strides = [1, 1]} : vector<2x384xf32> to vector<2x128xf32>
    %65 = arith.mulf %54, %64 : vector<2x128xf32>
    %66 = arith.addf %63, %65 : vector<2x128xf32>
    %67 = math.tanh %66 : vector<2x128xf32>
    %cst_21 = arith.constant 1.000000e+00 : f32
    %68 = vector.broadcast %cst_21 : f32 to vector<2x128xf32>
    %69 = arith.subf %68, %62 : vector<2x128xf32>
    %70 = arith.mulf %69, %67 : vector<2x128xf32>
    %71 = arith.mulf %62, %38 : vector<2x128xf32>
    %72 = arith.addf %70, %71 : vector<2x128xf32>
    %c2 = arith.constant 2 : index
    %c0_22 = arith.constant 0 : index
    %c0_23 = arith.constant 0 : index
    %73 = vector.load %arg0[%c2, %c0_22, %c0_23] : memref<4x2x64xf32, #tpu.memory_space<vmem>>, vector<1x2x64xf32>
    %74 = vector.shape_cast %73 : vector<1x2x64xf32> to vector<2x64xf32>
    %cst_24 = arith.constant dense<0.000000e+00> : vector<2x384xf32>
    %75 = tpu.matmul %74, %0, %cst_24 {dimension_numbers = #tpu.dot_dimension_numbers<[1], [0], [0], [1], [0, 0, 1, 1], [], []>} : vector<2x64xf32>, vector<64x384xf32>, vector<2x384xf32> -> vector<2x384xf32>
    %76 = vector.broadcast %2 : vector<1x384xf32> to vector<2x384xf32>
    %77 = arith.addf %75, %76 : vector<2x384xf32>
    %cst_25 = arith.constant dense<0.000000e+00> : vector<2x384xf32>
    %78 = tpu.matmul %72, %1, %cst_25 {dimension_numbers = #tpu.dot_dimension_numbers<[1], [0], [0], [1], [0, 0, 1, 1], [], []>} : vector<2x128xf32>, vector<128x384xf32>, vector<2x384xf32> -> vector<2x384xf32>
    %79 = vector.broadcast %3 : vector<1x384xf32> to vector<2x384xf32>
    %80 = arith.addf %78, %79 : vector<2x384xf32>
    %81 = vector.extract_strided_slice %77 {offsets = [0, 0], sizes = [2, 128], strides = [1, 1]} : vector<2x384xf32> to vector<2x128xf32>
    %82 = vector.extract_strided_slice %80 {offsets = [0, 0], sizes = [2, 128], strides = [1, 1]} : vector<2x384xf32> to vector<2x128xf32>
    %83 = arith.addf %81, %82 : vector<2x128xf32>
    %84 = arith.negf %83 : vector<2x128xf32>
    %85 = math.exp %84 : vector<2x128xf32>
    %cst_26 = arith.constant 1.000000e+00 : f32
    %86 = vector.broadcast %cst_26 : f32 to vector<2x128xf32>
    %87 = arith.addf %86, %85 : vector<2x128xf32>
    %88 = arith.divf %86, %87 : vector<2x128xf32>
    %89 = vector.extract_strided_slice %77 {offsets = [0, 128], sizes = [2, 128], strides = [1, 1]} : vector<2x384xf32> to vector<2x128xf32>
    %90 = vector.extract_strided_slice %80 {offsets = [0, 128], sizes = [2, 128], strides = [1, 1]} : vector<2x384xf32> to vector<2x128xf32>
    %91 = arith.addf %89, %90 : vector<2x128xf32>
    %92 = arith.negf %91 : vector<2x128xf32>
    %93 = math.exp %92 : vector<2x128xf32>
    %cst_27 = arith.constant 1.000000e+00 : f32
    %94 = vector.broadcast %cst_27 : f32 to vector<2x128xf32>
    %95 = arith.addf %94, %93 : vector<2x128xf32>
    %96 = arith.divf %94, %95 : vector<2x128xf32>
    %97 = vector.extract_strided_slice %77 {offsets = [0, 256], sizes = [2, 128], strides = [1, 1]} : vector<2x384xf32> to vector<2x128xf32>
    %98 = vector.extract_strided_slice %80 {offsets = [0, 256], sizes = [2, 128], strides = [1, 1]} : vector<2x384xf32> to vector<2x128xf32>
    %99 = arith.mulf %88, %98 : vector<2x128xf32>
    %100 = arith.addf %97, %99 : vector<2x128xf32>
    %101 = math.tanh %100 : vector<2x128xf32>
    %cst_28 = arith.constant 1.000000e+00 : f32
    %102 = vector.broadcast %cst_28 : f32 to vector<2x128xf32>
    %103 = arith.subf %102, %96 : vector<2x128xf32>
    %104 = arith.mulf %103, %101 : vector<2x128xf32>
    %105 = arith.mulf %96, %72 : vector<2x128xf32>
    %106 = arith.addf %104, %105 : vector<2x128xf32>
    %c3 = arith.constant 3 : index
    %c0_29 = arith.constant 0 : index
    %c0_30 = arith.constant 0 : index
    %107 = vector.load %arg0[%c3, %c0_29, %c0_30] : memref<4x2x64xf32, #tpu.memory_space<vmem>>, vector<1x2x64xf32>
    %108 = vector.shape_cast %107 : vector<1x2x64xf32> to vector<2x64xf32>
    %cst_31 = arith.constant dense<0.000000e+00> : vector<2x384xf32>
    %109 = tpu.matmul %108, %0, %cst_31 {dimension_numbers = #tpu.dot_dimension_numbers<[1], [0], [0], [1], [0, 0, 1, 1], [], []>} : vector<2x64xf32>, vector<64x384xf32>, vector<2x384xf32> -> vector<2x384xf32>
    %110 = vector.broadcast %2 : vector<1x384xf32> to vector<2x384xf32>
    %111 = arith.addf %109, %110 : vector<2x384xf32>
    %cst_32 = arith.constant dense<0.000000e+00> : vector<2x384xf32>
    %112 = tpu.matmul %106, %1, %cst_32 {dimension_numbers = #tpu.dot_dimension_numbers<[1], [0], [0], [1], [0, 0, 1, 1], [], []>} : vector<2x128xf32>, vector<128x384xf32>, vector<2x384xf32> -> vector<2x384xf32>
    %113 = vector.broadcast %3 : vector<1x384xf32> to vector<2x384xf32>
    %114 = arith.addf %112, %113 : vector<2x384xf32>
    %115 = vector.extract_strided_slice %111 {offsets = [0, 0], sizes = [2, 128], strides = [1, 1]} : vector<2x384xf32> to vector<2x128xf32>
    %116 = vector.extract_strided_slice %114 {offsets = [0, 0], sizes = [2, 128], strides = [1, 1]} : vector<2x384xf32> to vector<2x128xf32>
    %117 = arith.addf %115, %116 : vector<2x128xf32>
    %118 = arith.negf %117 : vector<2x128xf32>
    %119 = math.exp %118 : vector<2x128xf32>
    %cst_33 = arith.constant 1.000000e+00 : f32
    %120 = vector.broadcast %cst_33 : f32 to vector<2x128xf32>
    %121 = arith.addf %120, %119 : vector<2x128xf32>
    %122 = arith.divf %120, %121 : vector<2x128xf32>
    %123 = vector.extract_strided_slice %111 {offsets = [0, 128], sizes = [2, 128], strides = [1, 1]} : vector<2x384xf32> to vector<2x128xf32>
    %124 = vector.extract_strided_slice %114 {offsets = [0, 128], sizes = [2, 128], strides = [1, 1]} : vector<2x384xf32> to vector<2x128xf32>
    %125 = arith.addf %123, %124 : vector<2x128xf32>
    %126 = arith.negf %125 : vector<2x128xf32>
    %127 = math.exp %126 : vector<2x128xf32>
    %cst_34 = arith.constant 1.000000e+00 : f32
    %128 = vector.broadcast %cst_34 : f32 to vector<2x128xf32>
    %129 = arith.addf %128, %127 : vector<2x128xf32>
    %130 = arith.divf %128, %129 : vector<2x128xf32>
    %131 = vector.extract_strided_slice %111 {offsets = [0, 256], sizes = [2, 128], strides = [1, 1]} : vector<2x384xf32> to vector<2x128xf32>
    %132 = vector.extract_strided_slice %114 {offsets = [0, 256], sizes = [2, 128], strides = [1, 1]} : vector<2x384xf32> to vector<2x128xf32>
    %133 = arith.mulf %122, %132 : vector<2x128xf32>
    %134 = arith.addf %131, %133 : vector<2x128xf32>
    %135 = math.tanh %134 : vector<2x128xf32>
    %cst_35 = arith.constant 1.000000e+00 : f32
    %136 = vector.broadcast %cst_35 : f32 to vector<2x128xf32>
    %137 = arith.subf %136, %130 : vector<2x128xf32>
    %138 = arith.mulf %137, %135 : vector<2x128xf32>
    %139 = arith.mulf %130, %106 : vector<2x128xf32>
    %140 = arith.addf %138, %139 : vector<2x128xf32>
    %c0_36 = arith.constant 0 : index
    %c0_37 = arith.constant 0 : index
    %141 = vector.load %arg5[%c0_36, %c0_37] : memref<128x6xf32, #tpu.memory_space<vmem>>, vector<128x6xf32>
    %cst_38 = arith.constant dense<0.000000e+00> : vector<2x6xf32>
    %142 = tpu.matmul %140, %141, %cst_38 {dimension_numbers = #tpu.dot_dimension_numbers<[1], [0], [0], [1], [0, 0, 1, 1], [], []>} : vector<2x128xf32>, vector<128x6xf32>, vector<2x6xf32> -> vector<2x6xf32>
    %c0_39 = arith.constant 0 : index
    %c0_40 = arith.constant 0 : index
    %143 = vector.load %arg6[%c0_39, %c0_40] : memref<1x6xf32, #tpu.memory_space<vmem>>, vector<1x6xf32>
    %144 = vector.broadcast %143 : vector<1x6xf32> to vector<2x6xf32>
    %145 = arith.addf %142, %144 : vector<2x6xf32>
    %c0_41 = arith.constant 0 : index
    %c0_42 = arith.constant 0 : index
    %146 = vector.load %arg7[%c0_41, %c0_42] : memref<2x6xf32, #tpu.memory_space<vmem>>, vector<2x6xf32>
    tpu.vector_store %arg7[%c0_41, %c0_42], %145 {strides = array<i32>} : memref<2x6xf32, #tpu.memory_space<vmem>>, vector<2x6xf32>,
    return
  }
}

</mosaic_0001>

<llo_original>
// kernel: raw_widar3_forward.3
$region0: #{raw_widar3_forward.3}
  #allocation0 [shape = 'u32[]', space=smem, size = 0x4, offset = 0x4, fixed_abs, tag = 'smem constant byte address 0x4 - core index']
  #allocation1 [shape = 'u32[72,128]{1,0:T(1,128)}', space=vmem, size = 0x9000, scoped, tag = 'internal scratch']
  %s0 = inlined_call_operand.vmem [shape: bf16[4,4,128,25], index: 0, kind: input, shape index: {}]
  %s1 = inlined_call_operand.vmem [shape: bf16[4,25,16], index: 1, kind: input, shape index: {}]
  %s2 = inlined_call_operand.vmem [shape: f32[4,1,16], index: 2, kind: input, shape index: {}]
  %s3 = inlined_call_operand.vmem [shape: bf16[4,128,16], index: 3, kind: output, shape index: {}]
  %s4 = sld [smem:[#allocation0]]
  $region45: #{raw_widar3_forward.3} parent=0
    _
  %s6 = ssub.s32 1, %s4
  %s7 = scalar_select 0, %s6, %s4
  loop: start=0, step=1, limit=6
  $region2: #{raw_widar3_forward.3} parent=0 // loop_pre_header
    _
  $region3: #{raw_widar3_forward.3} parent=0 // loop_header
    %s9 = sphi 0, %s13
    %p10 = scmp.ge.s32.totalorder %s9, 6
    %s19 = sphi 0, %s21
    %s22 = sphi 0, %s19
    %s23 = sphi 0, %s22
    %s39 = sphi 0, %s23
    %s45 = sphi 0, %s47
    %s48 = sphi 0, %s45
    %s49 = sphi 0, %s48
    %s65 = sphi 0, %s49
    %s71 = sphi 0, %s73
    %s74 = sphi 0, %s71
    %s75 = sphi 0, %s74
    %s91 = sphi 0, %s75
    %s97 = sphi 0, %s99
    %s100 = sphi 0, %s97
    %s101 = sphi 0, %s100
    %s117 = sphi 0, %s101
  $region4: #{raw_widar3_forward.3} parent=0 // loop_header_branch
    %12 = sbr.rel (%p10) target = $region8
  $region5: #{raw_widar3_forward.3} parent=0 // loop_body
    %s14 = ssub.s32 %s9, 1
    %s15 = ssub.s32 %s9, 2
    %s16 = sadd.s32 %s9, 1
    %s17 = ssub.s32 %s9, %s16
    %p18 = scmp.eq.s32.totalorder %s17, 0
    %s20 = sadd.s32 %s19, 1
    %s21 = scalar_select %p18, %s19, %s20
    %p24 = pneg %p18
    %p25 = scmp.eq.s32.totalorder %s9, 3
    %p26 = por %p24, %p25
    %p27 = scmp.ne.s32.totalorder %s19, %s22
    %p28 = scmp.eq.s32.totalorder %s9, 0
    %p29 = por %p27, %p28
    %p30 = scmp.ne.s32.totalorder %s19, %s22
    %p31 = scmp.eq.s32.totalorder %s14, 3
    %p32 = por %p30, %p31
    %p33 = scmp.ne.s32.totalorder %s22, %s23
    %p34 = scmp.eq.s32.totalorder %s14, 0
    %p35 = por %p33, %p34
    %p36 = scmp.ne.s32.totalorder %s22, %s23
    %p37 = scmp.eq.s32.totalorder %s15, 3
    %p38 = por %p36, %p37
    %p40 = scmp.ne.s32.totalorder %s23, %s39
    %p41 = scmp.eq.s32.totalorder %s15, 0
    %p42 = por %p40, %p41
    %s43 = ssub.s32 %s9, %s16
    %p44 = scmp.eq.s32.totalorder %s43, 0
    %s46 = sadd.s32 %s45, 1
    %s47 = scalar_select %p44, %s45, %s46
    %p50 = pneg %p44
    %p51 = scmp.eq.s32.totalorder %s9, 3
    %p52 = por %p50, %p51
    %p53 = scmp.ne.s32.totalorder %s45, %s48
    %p54 = scmp.eq.s32.totalorder %s9, 0
    %p55 = por %p53, %p54
    %p56 = scmp.ne.s32.totalorder %s45, %s48
    %p57 = scmp.eq.s32.totalorder %s14, 3
    %p58 = por %p56, %p57
    %p59 = scmp.ne.s32.totalorder %s48, %s49
    %p60 = scmp.eq.s32.totalorder %s14, 0
    %p61 = por %p59, %p60
    %p62 = scmp.ne.s32.totalorder %s48, %s49
    %p63 = scmp.eq.s32.totalorder %s15, 3
    %p64 = por %p62, %p63
    %p66 = scmp.ne.s32.totalorder %s49, %s65
    %p67 = scmp.eq.s32.totalorder %s15, 0
    %p68 = por %p66, %p67
    %s69 = ssub.s32 %s9, %s16
    %p70 = scmp.eq.s32.totalorder %s69, 0
    %s72 = sadd.s32 %s71, 1
    %s73 = scalar_select %p70, %s71, %s72
    %p76 = pneg %p70
    %p77 = scmp.eq.s32.totalorder %s9, 3
    %p78 = por %p76, %p77
    %p79 = scmp.ne.s32.totalorder %s71, %s74
    %p80 = scmp.eq.s32.totalorder %s9, 0
    %p81 = por %p79, %p80
    %p82 = scmp.ne.s32.totalorder %s71, %s74
    %p83 = scmp.eq.s32.totalorder %s14, 3
    %p84 = por %p82, %p83
    %p85 = scmp.ne.s32.totalorder %s74, %s75
    %p86 = scmp.eq.s32.totalorder %s14, 0
    %p87 = por %p85, %p86
    %p88 = scmp.ne.s32.totalorder %s74, %s75
    %p89 = scmp.eq.s32.totalorder %s15, 3
    %p90 = por %p88, %p89
    %p92 = scmp.ne.s32.totalorder %s75, %s91
    %p93 = scmp.eq.s32.totalorder %s15, 0
    %p94 = por %p92, %p93
    %s95 = ssub.s32 %s9, %s16
    %p96 = scmp.eq.s32.totalorder %s95, 0
    %s98 = sadd.s32 %s97, 1
    %s99 = scalar_select %p96, %s97, %s98
    %p102 = pneg %p96
    %p103 = scmp.eq.s32.totalorder %s9, 3
    %p104 = por %p102, %p103
    %p105 = scmp.ne.s32.totalorder %s97, %s100
    %p106 = scmp.eq.s32.totalorder %s9, 0
    %p107 = por %p105, %p106
    %p108 = scmp.ne.s32.totalorder %s97, %s100
    %p109 = scmp.eq.s32.totalorder %s14, 3
    %p110 = por %p108, %p109
    %p111 = scmp.ne.s32.totalorder %s100, %s101
    %p112 = scmp.eq.s32.totalorder %s14, 0
    %p113 = por %p111, %p112
    %p114 = scmp.ne.s32.totalorder %s100, %s101
    %p115 = scmp.eq.s32.totalorder %s15, 3
    %p116 = por %p114, %p115
    %p118 = scmp.ne.s32.totalorder %s101, %s117
    %p119 = scmp.eq.s32.totalorder %s15, 0
    %p120 = por %p118, %p119
    %p121 = scmp.le.s32.totalorder 1, %s9
    %p122 = scmp.lt.s32.totalorder %s9, 5
    %p123 = pnand %p121, %p122
    %p124 = pneg %p123
    // Predicated region
    $region9: #{raw_widar3_forward.3} parent=5 // pred_check
      _
    $region10: #{raw_widar3_forward.3} parent=5 // pred_check_branch
      %126 = sbr.rel (%p123) target = $region12
    $region11: #{raw_widar3_forward.3} parent=5 // pred_region
      %s127 = ssub.s32 %s9, 1
    $region12: #{raw_widar3_forward.3} parent=5 // pred_fallthru
      _
    %p128 = scmp.lt.s32.totalorder %s9, 4
    // Predicated region
    $region13: #{raw_widar3_forward.3} parent=5 // pred_check
      %p129 = pneg %p128
    $region14: #{raw_widar3_forward.3} parent=5 // pred_check_branch
      %131 = sbr.rel (%p129) target = $region16
    $region15: #{raw_widar3_forward.3} parent=5 // pred_region
      // Predicated region
      $region17: #{raw_widar3_forward.3} parent=15 // pred_check
        %p132 = pneg %p29
      $region18: #{raw_widar3_forward.3} parent=15 // pred_check_branch
        %134 = sbr.rel (%p132) target = $region20
      $region19: #{raw_widar3_forward.3} parent=15 // pred_region
        %p135 = scmp.lt.s32.totalorder %s9, 3
        %s136 = scalar_select %p135, %s9, 3
        %s137 = smul.addr %s136, 64
        %s138 = smul.addr %s137, 4
        %s139 = scalar_lea.vmem %s0, %s138
      $region20: #{raw_widar3_forward.3} parent=15 // pred_fallthru
        _
      // Predicated region
      $region21: #{raw_widar3_forward.3} parent=15 // pred_check
        %p140 = pneg %p55
      $region22: #{raw_widar3_forward.3} parent=15 // pred_check_branch
        %142 = sbr.rel (%p140) target = $region24
      $region23: #{raw_widar3_forward.3} parent=15 // pred_region
        %p143 = scmp.lt.s32.totalorder %s9, 3
        %s144 = scalar_select %p143, %s9, 3
        %s145 = smul.addr %s144, 4
        %s146 = smul.addr %s145, 4
        %s147 = scalar_lea.vmem %s1, %s146
      $region24: #{raw_widar3_forward.3} parent=15 // pred_fallthru
        _
      // Predicated region
      $region25: #{raw_widar3_forward.3} parent=15 // pred_check
        %p148 = pneg %p81
      $region26: #{raw_widar3_forward.3} parent=15 // pred_check_branch
        %150 = sbr.rel (%p148) target = $region28
      $region27: #{raw_widar3_forward.3} parent=15 // pred_region
        %p151 = scmp.lt.s32.totalorder %s9, 3
        %s152 = scalar_select %p151, %s9, 3
        %s153 = scalar_lea.vmem %s2, %s152
      $region28: #{raw_widar3_forward.3} parent=15 // pred_fallthru
        _
    $region16: #{raw_widar3_forward.3} parent=5 // pred_fallthru
      _
    %p154 = scmp.le.s32.totalorder 1, %s9
    %p155 = scmp.lt.s32.totalorder %s9, 5
    %p156 = pnand %p154, %p155
    %p157 = pneg %p156
    // Predicated region
    $region29: #{raw_widar3_forward.3} parent=5 // pred_check
      _
    $region30: #{raw_widar3_forward.3} parent=5 // pred_check_branch
      %159 = sbr.rel (%p156) target = $region32
    $region31: #{raw_widar3_forward.3} parent=5 // pred_region
      %s160 = ssub.s32 %s9, 1
      %p161 = scmp.lt.s32.totalorder %s14, 3
      %s162 = scalar_select %p161, %s14, 3
      %s163 = smul.addr %s162, 64
      %s164 = smul.addr %s163, 4
      %s165 = scalar_lea.vmem %s0, %s164
      %p166 = pneg %p35
      %p167 = pneg %p32
      %p168 = scmp.lt.s32.totalorder %s14, 3
      %s169 = scalar_select %p168, %s14, 3
      %s170 = smul.addr %s169, 4
      %s171 = smul.addr %s170, 4
      %s172 = scalar_lea.vmem %s1, %s171
      %p173 = pneg %p61
      %p174 = pneg %p58
      %p175 = scmp.lt.s32.totalorder %s14, 3
      %s176 = scalar_select %p175, %s14, 3
      %s177 = scalar_lea.vmem %s2, %s176
      %p178 = pneg %p87
      %p179 = pneg %p84
      %p180 = pneg %p113
      %p181 = pneg %p110
      %p182 = scmp.lt.s32.totalorder %s14, 3
      %s183 = scalar_select %p182, %s14, 3
      %s184 = smul.addr %s183, 16
      %s185 = smul.addr %s184, 4
      %s186 = scalar_lea.vmem %s3, %s185
      %p187 = scmp.lt.s32.totalorder %s14, 3
      %s188 = scalar_select %p187, %s14, 3
      %s189 = smul.addr %s188, 64
      %s190 = smul.addr %s189, 4
      %s191 = scalar_lea.vmem %s0, %s190
      %p192 = scmp.lt.s32.totalorder %s14, 3
      %s193 = scalar_select %p192, %s14, 3
      %s194 = smul.addr %s193, 4
      %s195 = smul.addr %s194, 4
      %s196 = scalar_lea.vmem %s1, %s195
      %p197 = scmp.lt.s32.totalorder %s14, 3
      %s198 = scalar_select %p197, %s14, 3
      %s199 = scalar_lea.vmem %s2, %s198
      %p200 = scmp.lt.s32.totalorder %s14, 3
      %s201 = scalar_select %p200, %s14, 3
      %s202 = smul.addr %s201, 16
      %s203 = smul.addr %s202, 4
      %s204 = scalar_lea.vmem %s3, %s203
      %v206 = vld [vmem:[%s191] sm:$0xf]
      %v207 = vld [vmem:[%s191 + $0x4] sm:$0xf]
      %v208 = vld [vmem:[%s191 + $0x8] sm:$0xf]
      %v209 = vld [vmem:[%s191 + $0xc] sm:$0xf]
      %v210 = vld [vmem:[%s191 + $0x10] sm:$0xf]
      %v211 = vld [vmem:[%s191 + $0x14] sm:$0xf]
      %v212 = vld [vmem:[%s191 + $0x18] sm:$0xf]
      %v213 = vld [vmem:[%s191 + $0x1c] sm:$0xf]
      %v214 = vld [vmem:[%s191 + $0x20] sm:$0xf]
      %v215 = vld [vmem:[%s191 + $0x24] sm:$0xf]
      %v216 = vld [vmem:[%s191 + $0x28] sm:$0xf]
      %v217 = vld [vmem:[%s191 + $0x2c] sm:$0xf]
      %v218 = vld [vmem:[%s191 + $0x30] sm:$0xf]
      %v219 = vld [vmem:[%s191 + $0x34] sm:$0xf]
      %v220 = vld [vmem:[%s191 + $0x38] sm:$0xf]
      %v221 = vld [vmem:[%s191 + $0x3c] sm:$0xf]
      %v222 = vld [vmem:[%s191 + $0x40] sm:$0xf]
      %v223 = vld [vmem:[%s191 + $0x44] sm:$0xf]
      %v224 = vld [vmem:[%s191 + $0x48] sm:$0xf]
      %v225 = vld [vmem:[%s191 + $0x4c] sm:$0xf]
      %v226 = vld [vmem:[%s191 + $0x50] sm:$0xf]
      %v227 = vld [vmem:[%s191 + $0x54] sm:$0xf]
      %v228 = vld [vmem:[%s191 + $0x58] sm:$0xf]
      %v229 = vld [vmem:[%s191 + $0x5c] sm:$0xf]
      %v230 = vld [vmem:[%s191 + $0x60] sm:$0xf]
      %v231 = vld [vmem:[%s191 + $0x64] sm:$0xf]
      %v232 = vld [vmem:[%s191 + $0x68] sm:$0xf]
      %v233 = vld [vmem:[%s191 + $0x6c] sm:$0xf]
      %v234 = vld [vmem:[%s191 + $0x70] sm:$0xf]
      %v235 = vld [vmem:[%s191 + $0x74] sm:$0xf]
      %v236 = vld [vmem:[%s191 + $0x78] sm:$0xf]
      %v237 = vld [vmem:[%s191 + $0x7c] sm:$0xf]
      %v238 = vld [vmem:[%s191 + $0x80] sm:$0xf]
      %v239 = vld [vmem:[%s191 + $0x84] sm:$0xf]
      %v240 = vld [vmem:[%s191 + $0x88] sm:$0xf]
      %v241 = vld [vmem:[%s191 + $0x8c] sm:$0xf]
      %v242 = vld [vmem:[%s191 + $0x90] sm:$0xf]
      %v243 = vld [vmem:[%s191 + $0x94] sm:$0xf]
      %v244 = vld [vmem:[%s191 + $0x98] sm:$0xf]
      %v245 = vld [vmem:[%s191 + $0x9c] sm:$0xf]
      %v246 = vld [vmem:[%s191 + $0xa0] sm:$0xf]
      %v247 = vld [vmem:[%s191 + $0xa4] sm:$0xf]
      %v248 = vld [vmem:[%s191 + $0xa8] sm:$0xf]
      %v249 = vld [vmem:[%s191 + $0xac] sm:$0xf]
      %v250 = vld [vmem:[%s191 + $0xb0] sm:$0xf]
      %v251 = vld [vmem:[%s191 + $0xb4] sm:$0xf]
      %v252 = vld [vmem:[%s191 + $0xb8] sm:$0xf]
      %v253 = vld [vmem:[%s191 + $0xbc] sm:$0xf]
      %v254 = vld [vmem:[%s191 + $0xc0] sm:$0xf]
      %v255 = vld [vmem:[%s191 + $0xc4] sm:$0xf]
      %v256 = vld [vmem:[%s191 + $0xc8] sm:$0xf]
      %v257 = vld [vmem:[%s191 + $0xcc] sm:$0xf]
      %v258 = vld [vmem:[%s191 + $0xd0] sm:$0xf]
      %v259 = vld [vmem:[%s191 + $0xd4] sm:$0xf]
      %v260 = vld [vmem:[%s191 + $0xd8] sm:$0xf]
      %v261 = vld [vmem:[%s191 + $0xdc] sm:$0xf]
      %v262 = vld [vmem:[%s191 + $0xe0] sm:$0xf]
      %v263 = vld [vmem:[%s191 + $0xe4] sm:$0xf]
      %v264 = vld [vmem:[%s191 + $0xe8] sm:$0xf]
      %v265 = vld [vmem:[%s191 + $0xec] sm:$0xf]
      %v266 = vld [vmem:[%s191 + $0xf0] sm:$0xf]
      %v267 = vld [vmem:[%s191 + $0xf4] sm:$0xf]
      %v268 = vld [vmem:[%s191 + $0xf8] sm:$0xf]
      %v269 = vld [vmem:[%s191 + $0xfc] sm:$0xf]
      %v270 = vld [vmem:[%s196] sm:$0xf]
      %v271 = vld [vmem:[%s196 + $0x4] sm:$0xf]
      %v272 = vld [vmem:[%s196 + $0x8] sm:$0xf]
      %v273 = vld [vmem:[%s196 + $0xc] sm:$0x1]
      %v338 = vunpack.c.l.b16 %v206
      %v339 = vunpack.c.l.b16 %v207
      %v340 = vunpack.c.l.b16 %v208
      %v341 = vunpack.c.l.b16 %v209
      %v342 = vunpack.c.l.b16 %v210
      %v343 = vunpack.c.l.b16 %v211
      %v344 = vunpack.c.l.b16 %v212
      %v345 = vunpack.c.l.b16 %v213
      %v346 = vunpack.c.l.b16 %v214
      %v347 = vunpack.c.l.b16 %v215
      %v348 = vunpack.c.l.b16 %v216
      %v349 = vunpack.c.l.b16 %v217
      %v350 = vunpack.c.l.b16 %v218
      %v351 = vunpack.c.l.b16 %v219
      %v352 = vunpack.c.l.b16 %v220
      %v353 = vunpack.c.l.b16 %v221
      %v354 = vunpack.c.l.b16 %v222
      %v355 = vunpack.c.l.b16 %v223
      %v356 = vunpack.c.l.b16 %v224
      %v357 = vunpack.c.l.b16 %v225
      %v358 = vunpack.c.l.b16 %v226
      %v359 = vunpack.c.l.b16 %v227
      %v360 = vunpack.c.l.b16 %v228
      %v361 = vunpack.c.l.b16 %v229
      %v362 = vunpack.c.l.b16 %v230
      %v363 = vunpack.c.l.b16 %v231
      %v364 = vunpack.c.l.b16 %v232
      %v365 = vunpack.c.l.b16 %v233
      %v366 = vunpack.c.l.b16 %v234
      %v367 = vunpack.c.l.b16 %v235
      %v368 = vunpack.c.l.b16 %v236
      %v369 = vunpack.c.l.b16 %v237
      %v370 = vunpack.c.l.b16 %v238
      %v371 = vunpack.c.l.b16 %v239
      %v372 = vunpack.c.l.b16 %v240
      %v373 = vunpack.c.l.b16 %v241
      %v374 = vunpack.c.l.b16 %v242
      %v375 = vunpack.c.l.b16 %v243
      %v376 = vunpack.c.l.b16 %v244
      %v377 = vunpack.c.l.b16 %v245
      %v378 = vunpack.c.l.b16 %v246
      %v379 = vunpack.c.l.b16 %v247
      %v380 = vunpack.c.l.b16 %v248
      %v381 = vunpack.c.l.b16 %v249
      %v382 = vunpack.c.l.b16 %v250
      %v383 = vunpack.c.l.b16 %v251
      %v384 = vunpack.c.l.b16 %v252
      %v385 = vunpack.c.l.b16 %v253
      %v386 = vunpack.c.l.b16 %v254
      %v387 = vunpack.c.l.b16 %v255
      %v388 = vunpack.c.l.b16 %v256
      %v389 = vunpack.c.l.b16 %v257
      %v390 = vunpack.c.l.b16 %v258
      %v391 = vunpack.c.l.b16 %v259
      %v392 = vunpack.c.l.b16 %v260
      %v393 = vunpack.c.l.b16 %v261
      %v394 = vunpack.c.l.b16 %v262
      %v395 = vunpack.c.l.b16 %v263
      %v396 = vunpack.c.l.b16 %v264
      %v397 = vunpack.c.l.b16 %v265
      %v398 = vunpack.c.l.b16 %v266
      %v399 = vunpack.c.l.b16 %v267
      %v400 = vunpack.c.l.b16 %v268
      %v401 = vunpack.c.l.b16 %v269
      %v402 = vpack.c.b16 %v339, %v338
      %v403 = vpack.c.b16 %v341, %v340
      %v404 = vpack.c.b16 %v343, %v342
      %v405 = vpack.c.b16 %v345, %v344
      %v406 = vpack.c.b16 %v347, %v346
      %v407 = vpack.c.b16 %v349, %v348
      %v408 = vpack.c.b16 %v351, %v350
      %v409 = vpack.c.b16 %v353, %v352
      %v410 = vpack.c.b16 %v355, %v354
      %v411 = vpack.c.b16 %v357, %v356
      %v412 = vpack.c.b16 %v359, %v358
      %v413 = vpack.c.b16 %v361, %v360
      %v414 = vpack.c.b16 %v363, %v362
      %v415 = vpack.c.b16 %v365, %v364
      %v416 = vpack.c.b16 %v367, %v366
      %v417 = vpack.c.b16 %v369, %v368
      %v418 = vpack.c.b16 %v371, %v370
      %v419 = vpack.c.b16 %v373, %v372
      %v420 = vpack.c.b16 %v375, %v374
      %v421 = vpack.c.b16 %v377, %v376
      %v422 = vpack.c.b16 %v379, %v378
      %v423 = vpack.c.b16 %v381, %v380
      %v424 = vpack.c.b16 %v383, %v382
      %v425 = vpack.c.b16 %v385, %v384
      %v426 = vpack.c.b16 %v387, %v386
      %v427 = vpack.c.b16 %v389, %v388
      %v428 = vpack.c.b16 %v391, %v390
      %v429 = vpack.c.b16 %v393, %v392
      %v430 = vpack.c.b16 %v395, %v394
      %v431 = vpack.c.b16 %v397, %v396
      %v432 = vpack.c.b16 %v399, %v398
      %v433 = vpack.c.b16 %v401, %v400
      %v438 = vunpack.c.l.b16 %v270
      %v439 = vunpack.c.l.b16 %v271
      %v440 = vunpack.c.l.b16 %v272
      %v441 = vunpack.c.l.b16 %v273
      %v442 = vpack.c.b16 %v439, %v438
      %v443 = vpack.c.b16 %v441, %v440
      %vm445 = vcmask 203776
      %v447 = vsel %vm445, %v402, 0
      %v450 = vsel %vm445, %v403, 0
      %v453 = vsel %vm445, %v404, 0
      %v456 = vsel %vm445, %v405, 0
      %v459 = vsel %vm445, %v406, 0
      %v462 = vsel %vm445, %v407, 0
      %v465 = vsel %vm445, %v408, 0
      %v468 = vsel %vm445, %v409, 0
      %v471 = vsel %vm445, %v410, 0
      %v474 = vsel %vm445, %v411, 0
      %v477 = vsel %vm445, %v412, 0
      %v480 = vsel %vm445, %v413, 0
      %v483 = vsel %vm445, %v414, 0
      %v486 = vsel %vm445, %v415, 0
      %v489 = vsel %vm445, %v416, 0
      %v492 = vsel %vm445, %v417, 0
      %v495 = vsel %vm445, %v418, 0
      %v498 = vsel %vm445, %v419, 0
      %v501 = vsel %vm445, %v420, 0
      %v504 = vsel %vm445, %v421, 0
      %v507 = vsel %vm445, %v422, 0
      %v510 = vsel %vm445, %v423, 0
      %v513 = vsel %vm445, %v424, 0
      %v516 = vsel %vm445, %v425, 0
      %v519 = vsel %vm445, %v426, 0
      %v522 = vsel %vm445, %v427, 0
      %v525 = vsel %vm445, %v428, 0
      %v528 = vsel %vm445, %v429, 0
      %v531 = vsel %vm445, %v430, 0
      %v534 = vsel %vm445, %v431, 0
      %v537 = vsel %vm445, %v432, 0
      %v540 = vsel %vm445, %v433, 0
      %vm542 = vcmask 1043456
      %vm543 = vcmask 1044480
      %v544 = vsel %vm542, 4294967295, 65535
      %v545 = vsel %vm543, %v544, 0
      %v547 = vand.u32 %v443, %v545
      %549 = vmatpush.bf16.msra.mxu0 0
      %550 = vmatpush.bf16.msra.mxu0 0
      %551 = vmatpush.bf16.msra.mxu0 0
      %552 = vmatpush.bf16.msra.mxu0 0
      %553 = vmatpush.bf16.msra.mxu0 0
      %554 = vmatpush.bf16.msra.mxu0 0
      %555 = vmatpush.bf16.msra.mxu0 %v547
      %556 = vmatpush.bf16.msra.mxu0 %v442
      %557 = vmatmul.bf16.gmra.mxu0 %v447
      %v558 = vpop.f32.mrf.mxu0
      %v559 = vadd.f32 0.0, %v558
      %v560 = vpop.f32.mrf.mxu0
      %v561 = vadd.f32 0.0, %v560
      %562 = vmatmul.bf16.gmra.mxu0 %v450
      %v563 = vpop.f32.mrf.mxu0
      %v564 = vadd.f32 0.0, %v563
      %v565 = vpop.f32.mrf.mxu0
      %v566 = vadd.f32 0.0, %v565
      %567 = vmatmul.bf16.gmra.mxu0 %v453
      %v568 = vpop.f32.mrf.mxu0
      %v569 = vadd.f32 0.0, %v568
      %v570 = vpop.f32.mrf.mxu0
      %v571 = vadd.f32 0.0, %v570
      %572 = vmatmul.bf16.gmra.mxu0 %v456
      %v573 = vpop.f32.mrf.mxu0
      %v574 = vadd.f32 0.0, %v573
      %v575 = vpop.f32.mrf.mxu0
      %v576 = vadd.f32 0.0, %v575
      %577 = vmatmul.bf16.gmra.mxu0 %v459
      %v578 = vpop.f32.mrf.mxu0
      %v579 = vadd.f32 0.0, %v578
      %v580 = vpop.f32.mrf.mxu0
      %v581 = vadd.f32 0.0, %v580
      %582 = vmatmul.bf16.gmra.mxu0 %v462
      %v583 = vpop.f32.mrf.mxu0
      %v584 = vadd.f32 0.0, %v583
      %v585 = vpop.f32.mrf.mxu0
      %v586 = vadd.f32 0.0, %v585
      %587 = vmatmul.bf16.gmra.mxu0 %v465
      %v588 = vpop.f32.mrf.mxu0
      %v589 = vadd.f32 0.0, %v588
      %v590 = vpop.f32.mrf.mxu0
      %v591 = vadd.f32 0.0, %v590
      %592 = vmatmul.bf16.gmra.mxu0 %v468
      %v593 = vpop.f32.mrf.mxu0
      %v594 = vadd.f32 0.0, %v593
      %v595 = vpop.f32.mrf.mxu0
      %v596 = vadd.f32 0.0, %v595
      %597 = vmatmul.bf16.gmra.mxu0 %v471
      %v598 = vpop.f32.mrf.mxu0
      %v599 = vadd.f32 0.0, %v598
      %v600 = vpop.f32.mrf.mxu0
      %v601 = vadd.f32 0.0, %v600
      %602 = vmatmul.bf16.gmra.mxu0 %v474
      %v603 = vpop.f32.mrf.mxu0
      %v604 = vadd.f32 0.0, %v603
      %v605 = vpop.f32.mrf.mxu0
      %v606 = vadd.f32 0.0, %v605
      %607 = vmatmul.bf16.gmra.mxu0 %v477
      %v608 = vpop.f32.mrf.mxu0
      %v609 = vadd.f32 0.0, %v608
      %v610 = vpop.f32.mrf.mxu0
      %v611 = vadd.f32 0.0, %v610
      %612 = vmatmul.bf16.gmra.mxu0 %v480
      %v613 = vpop.f32.mrf.mxu0
      %v614 = vadd.f32 0.0, %v613
      %v615 = vpop.f32.mrf.mxu0
      %v616 = vadd.f32 0.0, %v615
      %617 = vmatmul.bf16.gmra.mxu0 %v483
      %v618 = vpop.f32.mrf.mxu0
      %v619 = vadd.f32 0.0, %v618
      %v620 = vpop.f32.mrf.mxu0
      %v621 = vadd.f32 0.0, %v620
      %622 = vmatmul.bf16.gmra.mxu0 %v486
      %v623 = vpop.f32.mrf.mxu0
      %v624 = vadd.f32 0.0, %v623
      %v625 = vpop.f32.mrf.mxu0
      %v626 = vadd.f32 0.0, %v625
      %627 = vmatmul.bf16.gmra.mxu0 %v489
      %v628 = vpop.f32.mrf.mxu0
      %v629 = vadd.f32 0.0, %v628
      %v630 = vpop.f32.mrf.mxu0
      %v631 = vadd.f32 0.0, %v630
      %632 = vmatmul.bf16.gmra.mxu0 %v492
      %v633 = vpop.f32.mrf.mxu0
      %v634 = vadd.f32 0.0, %v633
      %v635 = vpop.f32.mrf.mxu0
      %v636 = vadd.f32 0.0, %v635
      %637 = vmatmul.bf16.gmra.mxu0 %v495
      %v638 = vpop.f32.mrf.mxu0
      %v639 = vadd.f32 0.0, %v638
      %v640 = vpop.f32.mrf.mxu0
      %v641 = vadd.f32 0.0, %v640
      %642 = vmatmul.bf16.gmra.mxu0 %v498
      %v643 = vpop.f32.mrf.mxu0
      %v644 = vadd.f32 0.0, %v643
      %v645 = vpop.f32.mrf.mxu0
      %v646 = vadd.f32 0.0, %v645
      %647 = vmatmul.bf16.gmra.mxu0 %v501
      %v648 = vpop.f32.mrf.mxu0
      %v649 = vadd.f32 0.0, %v648
      %v650 = vpop.f32.mrf.mxu0
      %v651 = vadd.f32 0.0, %v650
      %652 = vmatmul.bf16.gmra.mxu0 %v504
      %v653 = vpop.f32.mrf.mxu0
      %v654 = vadd.f32 0.0, %v653
      %v655 = vpop.f32.mrf.mxu0
      %v656 = vadd.f32 0.0, %v655
      %657 = vmatmul.bf16.gmra.mxu0 %v507
      %v658 = vpop.f32.mrf.mxu0
      %v659 = vadd.f32 0.0, %v658
      %v660 = vpop.f32.mrf.mxu0
      %v661 = vadd.f32 0.0, %v660
      %662 = vmatmul.bf16.gmra.mxu0 %v510
      %v663 = vpop.f32.mrf.mxu0
      %v664 = vadd.f32 0.0, %v663
      %v665 = vpop.f32.mrf.mxu0
      %v666 = vadd.f32 0.0, %v665
      %667 = vmatmul.bf16.gmra.mxu0 %v513
      %v668 = vpop.f32.mrf.mxu0
      %v669 = vadd.f32 0.0, %v668
      %v670 = vpop.f32.mrf.mxu0
      %v671 = vadd.f32 0.0, %v670
      %672 = vmatmul.bf16.gmra.mxu0 %v516
      %v673 = vpop.f32.mrf.mxu0
      %v674 = vadd.f32 0.0, %v673
      %v675 = vpop.f32.mrf.mxu0
      %v676 = vadd.f32 0.0, %v675
      %677 = vmatmul.bf16.gmra.mxu0 %v519
      %v678 = vpop.f32.mrf.mxu0
      %v679 = vadd.f32 0.0, %v678
      %v680 = vpop.f32.mrf.mxu0
      %v681 = vadd.f32 0.0, %v680
      %682 = vmatmul.bf16.gmra.mxu0 %v522
      %v683 = vpop.f32.mrf.mxu0
      %v684 = vadd.f32 0.0, %v683
      %v685 = vpop.f32.mrf.mxu0
      %v686 = vadd.f32 0.0, %v685
      %687 = vmatmul.bf16.gmra.mxu0 %v525
      %v688 = vpop.f32.mrf.mxu0
      %v689 = vadd.f32 0.0, %v688
      %v690 = vpop.f32.mrf.mxu0
      %v691 = vadd.f32 0.0, %v690
      %692 = vmatmul.bf16.gmra.mxu0 %v528
      %v693 = vpop.f32.mrf.mxu0
      %v694 = vadd.f32 0.0, %v693
      %v695 = vpop.f32.mrf.mxu0
      %v696 = vadd.f32 0.0, %v695
      %697 = vmatmul.bf16.gmra.mxu0 %v531
      %v698 = vpop.f32.mrf.mxu0
      %v699 = vadd.f32 0.0, %v698
      %v700 = vpop.f32.mrf.mxu0
      %v701 = vadd.f32 0.0, %v700
      %702 = vmatmul.bf16.gmra.mxu0 %v534
      %v703 = vpop.f32.mrf.mxu0
      %v704 = vadd.f32 0.0, %v703
      %v705 = vpop.f32.mrf.mxu0
      %v706 = vadd.f32 0.0, %v705
      %707 = vmatmul.bf16.gmra.mxu0 %v537
      %v708 = vpop.f32.mrf.mxu0
      %v709 = vadd.f32 0.0, %v708
      %v710 = vpop.f32.mrf.mxu0
      %v711 = vadd.f32 0.0, %v710
      %712 = vmatmul.bf16.gmra.mxu0 %v540
      %v713 = vpop.f32.mrf.mxu0
      %v714 = vadd.f32 0.0, %v713
      %v715 = vpop.f32.mrf.mxu0
      %v716 = vadd.f32 0.0, %v715
      %717 = vdwg.mxu0
      %vm718 = vcmask 130048
      %v719 = vsel %vm718, %v559, -inf
      %v720 = vsel %vm718, %v599, -inf
      %v721 = vmax.f32 %v719, %v720
      %v722 = vsel %vm718, %v639, -inf
      %v723 = vmax.f32 %v721, %v722
      %v724 = vsel %vm718, %v679, -inf
      %v725 = vmax.f32 %v723, %v724
      %v726 = vsel %vm718, %v561, -inf
      %v727 = vsel %vm718, %v601, -inf
      %v728 = vmax.f32 %v726, %v727
      %v729 = vsel %vm718, %v641, -inf
      %v730 = vmax.f32 %v728, %v729
      %v731 = vsel %vm718, %v681, -inf
      %v732 = vmax.f32 %v730, %v731
      %v733 = vsel %vm718, %v564, -inf
      %v734 = vsel %vm718, %v604, -inf
      %v735 = vmax.f32 %v733, %v734
      %v736 = vsel %vm718, %v644, -inf
      %v737 = vmax.f32 %v735, %v736
      %v738 = vsel %vm718, %v684, -inf
      %v739 = vmax.f32 %v737, %v738
      %v740 = vsel %vm718, %v566, -inf
      %v741 = vsel %vm718, %v606, -inf
      %v742 = vmax.f32 %v740, %v741
      %v743 = vsel %vm718, %v646, -inf
      %v744 = vmax.f32 %v742, %v743
      %v745 = vsel %vm718, %v686, -inf
      %v746 = vmax.f32 %v744, %v745
      %v747 = vsel %vm718, %v569, -inf
      %v748 = vsel %vm718, %v609, -inf
      %v749 = vmax.f32 %v747, %v748
      %v750 = vsel %vm718, %v649, -inf
      %v751 = vmax.f32 %v749, %v750
      %v752 = vsel %vm718, %v689, -inf
      %v753 = vmax.f32 %v751, %v752
      %v754 = vsel %vm718, %v571, -inf
      %v755 = vsel %vm718, %v611, -inf
      %v756 = vmax.f32 %v754, %v755
      %v757 = vsel %vm718, %v651, -inf
      %v758 = vmax.f32 %v756, %v757
      %v759 = vsel %vm718, %v691, -inf
      %v760 = vmax.f32 %v758, %v759
      %v761 = vsel %vm718, %v574, -inf
      %v762 = vsel %vm718, %v614, -inf
      %v763 = vmax.f32 %v761, %v762
      %v764 = vsel %vm718, %v654, -inf
      %v765 = vmax.f32 %v763, %v764
      %v766 = vsel %vm718, %v694, -inf
      %v767 = vmax.f32 %v765, %v766
      %v768 = vsel %vm718, %v576, -inf
      %v769 = vsel %vm718, %v616, -inf
      %v770 = vmax.f32 %v768, %v769
      %v771 = vsel %vm718, %v656, -inf
      %v772 = vmax.f32 %v770, %v771
      %v773 = vsel %vm718, %v696, -inf
      %v774 = vmax.f32 %v772, %v773
      %v775 = vsel %vm718, %v579, -inf
      %v776 = vsel %vm718, %v619, -inf
      %v777 = vmax.f32 %v775, %v776
      %v778 = vsel %vm718, %v659, -inf
      %v779 = vmax.f32 %v777, %v778
      %v780 = vsel %vm718, %v699, -inf
      %v781 = vmax.f32 %v779, %v780
      %v782 = vsel %vm718, %v581, -inf
      %v783 = vsel %vm718, %v621, -inf
      %v784 = vmax.f32 %v782, %v783
      %v785 = vsel %vm718, %v661, -inf
      %v786 = vmax.f32 %v784, %v785
      %v787 = vsel %vm718, %v701, -inf
      %v788 = vmax.f32 %v786, %v787
      %v789 = vsel %vm718, %v584, -inf
      %v790 = vsel %vm718, %v624, -inf
      %v791 = vmax.f32 %v789, %v790
      %v792 = vsel %vm718, %v664, -inf
      %v793 = vmax.f32 %v791, %v792
      %v794 = vsel %vm718, %v704, -inf
      %v795 = vmax.f32 %v793, %v794
      %v796 = vsel %vm718, %v586, -inf
      %v797 = vsel %vm718, %v626, -inf
      %v798 = vmax.f32 %v796, %v797
      %v799 = vsel %vm718, %v666, -inf
      %v800 = vmax.f32 %v798, %v799
      %v801 = vsel %vm718, %v706, -inf
      %v802 = vmax.f32 %v800, %v801
      %v803 = vsel %vm718, %v589, -inf
      %v804 = vsel %vm718, %v629, -inf
      %v805 = vmax.f32 %v803, %v804
      %v806 = vsel %vm718, %v669, -inf
      %v807 = vmax.f32 %v805, %v806
      %v808 = vsel %vm718, %v709, -inf
      %v809 = vmax.f32 %v807, %v808
      %v810 = vsel %vm718, %v591, -inf
      %v811 = vsel %vm718, %v631, -inf
      %v812 = vmax.f32 %v810, %v811
      %v813 = vsel %vm718, %v671, -inf
      %v814 = vmax.f32 %v812, %v813
      %v815 = vsel %vm718, %v711, -inf
      %v816 = vmax.f32 %v814, %v815
      %v817 = vsel %vm718, %v594, -inf
      %v818 = vsel %vm718, %v634, -inf
      %v819 = vmax.f32 %v817, %v818
      %v820 = vsel %vm718, %v674, -inf
      %v821 = vmax.f32 %v819, %v820
      %v822 = vsel %vm718, %v714, -inf
      %v823 = vmax.f32 %v821, %v822
      %v824 = vsel %vm718, %v596, -inf
      %v825 = vsel %vm718, %v636, -inf
      %v826 = vmax.f32 %v824, %v825
      %v827 = vsel %vm718, %v676, -inf
      %v828 = vmax.f32 %v826, %v827
      %v829 = vsel %vm718, %v716, -inf
      %v830 = vmax.f32 %v828, %v829
      %v831 = vld [vmem:[%s199] sm:$0x1]
      %v833 = vperm.slane %v831, 0
      %v835 = vadd.f32 %v725, %v833
      %v836 = vadd.f32 %v732, %v833
      %v837 = vadd.f32 %v739, %v833
      %v838 = vadd.f32 %v746, %v833
      %v839 = vadd.f32 %v753, %v833
      %v840 = vadd.f32 %v760, %v833
      %v841 = vadd.f32 %v767, %v833
      %v842 = vadd.f32 %v774, %v833
      %v843 = vadd.f32 %v781, %v833
      %v844 = vadd.f32 %v788, %v833
      %v845 = vadd.f32 %v795, %v833
      %v846 = vadd.f32 %v802, %v833
      %v847 = vadd.f32 %v809, %v833
      %v848 = vadd.f32 %v816, %v833
      %v849 = vadd.f32 %v823, %v833
      %v850 = vadd.f32 %v830, %v833
      %v851 = vmax.f32 %v835, 0.0
      %v852 = vmax.f32 %v836, 0.0
      %v853 = vmax.f32 %v837, 0.0
      %v854 = vmax.f32 %v838, 0.0
      %v855 = vmax.f32 %v839, 0.0
      %v856 = vmax.f32 %v840, 0.0
      %v857 = vmax.f32 %v841, 0.0
      %v858 = vmax.f32 %v842, 0.0
      %v859 = vmax.f32 %v843, 0.0
      %v860 = vmax.f32 %v844, 0.0
      %v861 = vmax.f32 %v845, 0.0
      %v862 = vmax.f32 %v846, 0.0
      %v863 = vmax.f32 %v847, 0.0
      %v864 = vmax.f32 %v848, 0.0
      %v865 = vmax.f32 %v849, 0.0
      %v866 = vmax.f32 %v850, 0.0
      %v867 = vpack.c.bf16 %v851, %v851
      %v868 = vpack.c.bf16 %v852, %v852
      %v869 = vpack.c.bf16 %v853, %v853
      %v870 = vpack.c.bf16 %v854, %v854
      %v871 = vpack.c.bf16 %v855, %v855
      %v872 = vpack.c.bf16 %v856, %v856
      %v873 = vpack.c.bf16 %v857, %v857
      %v874 = vpack.c.bf16 %v858, %v858
      %v875 = vpack.c.bf16 %v859, %v859
      %v876 = vpack.c.bf16 %v860, %v860
      %v877 = vpack.c.bf16 %v861, %v861
      %v878 = vpack.c.bf16 %v862, %v862
      %v879 = vpack.c.bf16 %v863, %v863
      %v880 = vpack.c.bf16 %v864, %v864
      %v881 = vpack.c.bf16 %v865, %v865
      %v882 = vpack.c.bf16 %v866, %v866
      %vm883 = vcmask 125952
      %884 = vst.msk [vmem:[%s204] sm:$0xf] %vm883, %v867
      %885 = vst.msk [vmem:[%s204 + $0x4] sm:$0xf] %vm883, %v868
      %886 = vst.msk [vmem:[%s204 + $0x8] sm:$0xf] %vm883, %v869
      %887 = vst.msk [vmem:[%s204 + $0xc] sm:$0xf] %vm883, %v870
      %888 = vst.msk [vmem:[%s204 + $0x10] sm:$0xf] %vm883, %v871
      %889 = vst.msk [vmem:[%s204 + $0x14] sm:$0xf] %vm883, %v872
      %890 = vst.msk [vmem:[%s204 + $0x18] sm:$0xf] %vm883, %v873
      %891 = vst.msk [vmem:[%s204 + $0x1c] sm:$0xf] %vm883, %v874
      %892 = vst.msk [vmem:[%s204 + $0x20] sm:$0xf] %vm883, %v875
      %893 = vst.msk [vmem:[%s204 + $0x24] sm:$0xf] %vm883, %v876
      %894 = vst.msk [vmem:[%s204 + $0x28] sm:$0xf] %vm883, %v877
      %895 = vst.msk [vmem:[%s204 + $0x2c] sm:$0xf] %vm883, %v878
      %896 = vst.msk [vmem:[%s204 + $0x30] sm:$0xf] %vm883, %v879
      %897 = vst.msk [vmem:[%s204 + $0x34] sm:$0xf] %vm883, %v880
      %898 = vst.msk [vmem:[%s204 + $0x38] sm:$0xf] %vm883, %v881
      %899 = vst.msk [vmem:[%s204 + $0x3c] sm:$0xf] %vm883, %v882
      %p900 = scmp.lt.s32.totalorder %s14, 3
      %s901 = scalar_select %p900, %s14, 3
      %s902 = smul.addr %s901, 16
      %s903 = smul.addr %s902, 4
      %s904 = scalar_lea.vmem %s3, %s903
      // Predicated region
      $region33: #{raw_widar3_forward.3} parent=31 // pred_check
        %p905 = pneg %p110
      $region34: #{raw_widar3_forward.3} parent=31 // pred_check_branch
        %907 = sbr.rel (%p905) target = $region36
      $region35: #{raw_widar3_forward.3} parent=31 // pred_region
        _
      $region36: #{raw_widar3_forward.3} parent=31 // pred_fallthru
        _
    $region32: #{raw_widar3_forward.3} parent=5 // pred_fallthru
      _
    %p908 = scmp.le.s32.totalorder 2, %s9
    // Predicated region
    $region37: #{raw_widar3_forward.3} parent=5 // pred_check
      %p909 = pneg %p908
    $region38: #{raw_widar3_forward.3} parent=5 // pred_check_branch
      %911 = sbr.rel (%p909) target = $region40
    $region39: #{raw_widar3_forward.3} parent=5 // pred_region
      %s912 = ssub.s32 %s9, 2
      // Predicated region
      $region41: #{raw_widar3_forward.3} parent=39 // pred_check
        %p913 = pneg %p116
      $region42: #{raw_widar3_forward.3} parent=39 // pred_check_branch
        %915 = sbr.rel (%p913) target = $region44
      $region43: #{raw_widar3_forward.3} parent=39 // pred_region
        %p916 = scmp.lt.s32.totalorder %s15, 3
        %s917 = scalar_select %p916, %s15, 3
        %s918 = smul.addr %s917, 16
        %s919 = smul.addr %s918, 4
        %s920 = scalar_lea.vmem %s3, %s919
      $region44: #{raw_widar3_forward.3} parent=39 // pred_fallthru
        _
    $region40: #{raw_widar3_forward.3} parent=5 // pred_fallthru
      _
  $region6: #{raw_widar3_forward.3} parent=0 // loop_footer
    %s13 = sadd.s32 1, %s9
  $region7: #{raw_widar3_forward.3} parent=0 // loop_footer_branch
    %8 = sbr.rel target = $region3
  $region8: #{raw_widar3_forward.3} parent=0 // loop_exit
    _

// kernel: raw_widar3_forward.4
$region0: #{raw_widar3_forward.4}
  #allocation0 [shape = 'u32[]', space=smem, size = 0x4, offset = 0x4, fixed_abs, tag = 'smem constant byte address 0x4 - core index']
  #allocation1 [shape = 'u32[72,128]{1,0:T(1,128)}', space=vmem, size = 0x9000, scoped, tag = 'internal scratch']
  %s0 = inlined_call_operand.vmem [shape: bf16[4,2,1024], index: 0, kind: input, shape index: {}]
  %s1 = inlined_call_operand.vmem [shape: bf16[4,1024,64], index: 1, kind: input, shape index: {}]
  %s2 = inlined_call_operand.vmem [shape: f32[4,1,64], index: 2, kind: input, shape index: {}]
  %s3 = inlined_call_operand.vmem [shape: bf16[4,64,64], index: 3, kind: input, shape index: {}]
  %s4 = inlined_call_operand.vmem [shape: f32[4,1,64], index: 4, kind: input, shape index: {}]
  %s5 = inlined_call_operand.vmem [shape: f32[4,2,64], index: 5, kind: output, shape index: {}]
  %s6 = sld [smem:[#allocation0]]
  $region53: #{raw_widar3_forward.4} parent=0
    _
  %s8 = ssub.s32 1, %s6
  %s9 = scalar_select 0, %s8, %s6
  loop: start=0, step=1, limit=6
  $region2: #{raw_widar3_forward.4} parent=0 // loop_pre_header
    _
  $region3: #{raw_widar3_forward.4} parent=0 // loop_header
    %s11 = sphi 0, %s15
    %p12 = scmp.ge.s32.totalorder %s11, 6
    %s21 = sphi 0, %s23
    %s24 = sphi 0, %s21
    %s25 = sphi 0, %s24
    %s41 = sphi 0, %s25
    %s47 = sphi 0, %s49
    %s50 = sphi 0, %s47
    %s51 = sphi 0, %s50
    %s67 = sphi 0, %s51
    %s73 = sphi 0, %s75
    %s76 = sphi 0, %s73
    %s77 = sphi 0, %s76
    %s93 = sphi 0, %s77
    %s99 = sphi 0, %s101
    %s102 = sphi 0, %s99
    %s103 = sphi 0, %s102
    %s119 = sphi 0, %s103
    %s125 = sphi 0, %s127
    %s128 = sphi 0, %s125
    %s129 = sphi 0, %s128
    %s145 = sphi 0, %s129
    %s151 = sphi 0, %s153
    %s154 = sphi 0, %s151
    %s155 = sphi 0, %s154
    %s171 = sphi 0, %s155
  $region4: #{raw_widar3_forward.4} parent=0 // loop_header_branch
    %14 = sbr.rel (%p12) target = $region8
  $region5: #{raw_widar3_forward.4} parent=0 // loop_body
    %s16 = ssub.s32 %s11, 1
    %s17 = ssub.s32 %s11, 2
    %s18 = sadd.s32 %s11, 1
    %s19 = ssub.s32 %s11, %s18
    %p20 = scmp.eq.s32.totalorder %s19, 0
    %s22 = sadd.s32 %s21, 1
    %s23 = scalar_select %p20, %s21, %s22
    %p26 = pneg %p20
    %p27 = scmp.eq.s32.totalorder %s11, 3
    %p28 = por %p26, %p27
    %p29 = scmp.ne.s32.totalorder %s21, %s24
    %p30 = scmp.eq.s32.totalorder %s11, 0
    %p31 = por %p29, %p30
    %p32 = scmp.ne.s32.totalorder %s21, %s24
    %p33 = scmp.eq.s32.totalorder %s16, 3
    %p34 = por %p32, %p33
    %p35 = scmp.ne.s32.totalorder %s24, %s25
    %p36 = scmp.eq.s32.totalorder %s16, 0
    %p37 = por %p35, %p36
    %p38 = scmp.ne.s32.totalorder %s24, %s25
    %p39 = scmp.eq.s32.totalorder %s17, 3
    %p40 = por %p38, %p39
    %p42 = scmp.ne.s32.totalorder %s25, %s41
    %p43 = scmp.eq.s32.totalorder %s17, 0
    %p44 = por %p42, %p43
    %s45 = ssub.s32 %s11, %s18
    %p46 = scmp.eq.s32.totalorder %s45, 0
    %s48 = sadd.s32 %s47, 1
    %s49 = scalar_select %p46, %s47, %s48
    %p52 = pneg %p46
    %p53 = scmp.eq.s32.totalorder %s11, 3
    %p54 = por %p52, %p53
    %p55 = scmp.ne.s32.totalorder %s47, %s50
    %p56 = scmp.eq.s32.totalorder %s11, 0
    %p57 = por %p55, %p56
    %p58 = scmp.ne.s32.totalorder %s47, %s50
    %p59 = scmp.eq.s32.totalorder %s16, 3
    %p60 = por %p58, %p59
    %p61 = scmp.ne.s32.totalorder %s50, %s51
    %p62 = scmp.eq.s32.totalorder %s16, 0
    %p63 = por %p61, %p62
    %p64 = scmp.ne.s32.totalorder %s50, %s51
    %p65 = scmp.eq.s32.totalorder %s17, 3
    %p66 = por %p64, %p65
    %p68 = scmp.ne.s32.totalorder %s51, %s67
    %p69 = scmp.eq.s32.totalorder %s17, 0
    %p70 = por %p68, %p69
    %s71 = ssub.s32 %s11, %s18
    %p72 = scmp.eq.s32.totalorder %s71, 0
    %s74 = sadd.s32 %s73, 1
    %s75 = scalar_select %p72, %s73, %s74
    %p78 = pneg %p72
    %p79 = scmp.eq.s32.totalorder %s11, 3
    %p80 = por %p78, %p79
    %p81 = scmp.ne.s32.totalorder %s73, %s76
    %p82 = scmp.eq.s32.totalorder %s11, 0
    %p83 = por %p81, %p82
    %p84 = scmp.ne.s32.totalorder %s73, %s76
    %p85 = scmp.eq.s32.totalorder %s16, 3
    %p86 = por %p84, %p85
    %p87 = scmp.ne.s32.totalorder %s76, %s77
    %p88 = scmp.eq.s32.totalorder %s16, 0
    %p89 = por %p87, %p88
    %p90 = scmp.ne.s32.totalorder %s76, %s77
    %p91 = scmp.eq.s32.totalorder %s17, 3
    %p92 = por %p90, %p91
    %p94 = scmp.ne.s32.totalorder %s77, %s93
    %p95 = scmp.eq.s32.totalorder %s17, 0
    %p96 = por %p94, %p95
    %s97 = ssub.s32 %s11, %s18
    %p98 = scmp.eq.s32.totalorder %s97, 0
    %s100 = sadd.s32 %s99, 1
    %s101 = scalar_select %p98, %s99, %s100
    %p104 = pneg %p98
    %p105 = scmp.eq.s32.totalorder %s11, 3
    %p106 = por %p104, %p105
    %p107 = scmp.ne.s32.totalorder %s99, %s102
    %p108 = scmp.eq.s32.totalorder %s11, 0
    %p109 = por %p107, %p108
    %p110 = scmp.ne.s32.totalorder %s99, %s102
    %p111 = scmp.eq.s32.totalorder %s16, 3
    %p112 = por %p110, %p111
    %p113 = scmp.ne.s32.totalorder %s102, %s103
    %p114 = scmp.eq.s32.totalorder %s16, 0
    %p115 = por %p113, %p114
    %p116 = scmp.ne.s32.totalorder %s102, %s103
    %p117 = scmp.eq.s32.totalorder %s17, 3
    %p118 = por %p116, %p117
    %p120 = scmp.ne.s32.totalorder %s103, %s119
    %p121 = scmp.eq.s32.totalorder %s17, 0
    %p122 = por %p120, %p121
    %s123 = ssub.s32 %s11, %s18
    %p124 = scmp.eq.s32.totalorder %s123, 0
    %s126 = sadd.s32 %s125, 1
    %s127 = scalar_select %p124, %s125, %s126
    %p130 = pneg %p124
    %p131 = scmp.eq.s32.totalorder %s11, 3
    %p132 = por %p130, %p131
    %p133 = scmp.ne.s32.totalorder %s125, %s128
    %p134 = scmp.eq.s32.totalorder %s11, 0
    %p135 = por %p133, %p134
    %p136 = scmp.ne.s32.totalorder %s125, %s128
    %p137 = scmp.eq.s32.totalorder %s16, 3
    %p138 = por %p136, %p137
    %p139 = scmp.ne.s32.totalorder %s128, %s129
    %p140 = scmp.eq.s32.totalorder %s16, 0
    %p141 = por %p139, %p140
    %p142 = scmp.ne.s32.totalorder %s128, %s129
    %p143 = scmp.eq.s32.totalorder %s17, 3
    %p144 = por %p142, %p143
    %p146 = scmp.ne.s32.totalorder %s129, %s145
    %p147 = scmp.eq.s32.totalorder %s17, 0
    %p148 = por %p146, %p147
    %s149 = ssub.s32 %s11, %s18
    %p150 = scmp.eq.s32.totalorder %s149, 0
    %s152 = sadd.s32 %s151, 1
    %s153 = scalar_select %p150, %s151, %s152
    %p156 = pneg %p150
    %p157 = scmp.eq.s32.totalorder %s11, 3
    %p158 = por %p156, %p157
    %p159 = scmp.ne.s32.totalorder %s151, %s154
    %p160 = scmp.eq.s32.totalorder %s11, 0
    %p161 = por %p159, %p160
    %p162 = scmp.ne.s32.totalorder %s151, %s154
    %p163 = scmp.eq.s32.totalorder %s16, 3
    %p164 = por %p162, %p163
    %p165 = scmp.ne.s32.totalorder %s154, %s155
    %p166 = scmp.eq.s32.totalorder %s16, 0
    %p167 = por %p165, %p166
    %p168 = scmp.ne.s32.totalorder %s154, %s155
    %p169 = scmp.eq.s32.totalorder %s17, 3
    %p170 = por %p168, %p169
    %p172 = scmp.ne.s32.totalorder %s155, %s171
    %p173 = scmp.eq.s32.totalorder %s17, 0
    %p174 = por %p172, %p173
    %p175 = scmp.le.s32.totalorder 1, %s11
    %p176 = scmp.lt.s32.totalorder %s11, 5
    %p177 = pnand %p175, %p176
    %p178 = pneg %p177
    // Predicated region
    $region9: #{raw_widar3_forward.4} parent=5 // pred_check
      _
    $region10: #{raw_widar3_forward.4} parent=5 // pred_check_branch
      %180 = sbr.rel (%p177) target = $region12
    $region11: #{raw_widar3_forward.4} parent=5 // pred_region
      %s181 = ssub.s32 %s11, 1
    $region12: #{raw_widar3_forward.4} parent=5 // pred_fallthru
      _
    %p182 = scmp.lt.s32.totalorder %s11, 4
    // Predicated region
    $region13: #{raw_widar3_forward.4} parent=5 // pred_check
      %p183 = pneg %p182
    $region14: #{raw_widar3_forward.4} parent=5 // pred_check_branch
      %185 = sbr.rel (%p183) target = $region16
    $region15: #{raw_widar3_forward.4} parent=5 // pred_region
      // Predicated region
      $region17: #{raw_widar3_forward.4} parent=15 // pred_check
        %p186 = pneg %p31
      $region18: #{raw_widar3_forward.4} parent=15 // pred_check_branch
        %188 = sbr.rel (%p186) target = $region20
      $region19: #{raw_widar3_forward.4} parent=15 // pred_region
        %p189 = scmp.lt.s32.totalorder %s11, 3
        %s190 = scalar_select %p189, %s11, 3
        %s191 = smul.addr %s190, 8
        %s192 = scalar_lea.vmem %s0, %s191
      $region20: #{raw_widar3_forward.4} parent=15 // pred_fallthru
        _
      // Predicated region
      $region21: #{raw_widar3_forward.4} parent=15 // pred_check
        %p193 = pneg %p57
      $region22: #{raw_widar3_forward.4} parent=15 // pred_check_branch
        %195 = sbr.rel (%p193) target = $region24
      $region23: #{raw_widar3_forward.4} parent=15 // pred_region
        %p196 = scmp.lt.s32.totalorder %s11, 3
        %s197 = scalar_select %p196, %s11, 3
        %s198 = smul.addr %s197, 128
        %s199 = smul.addr %s198, 4
        %s200 = scalar_lea.vmem %s1, %s199
      $region24: #{raw_widar3_forward.4} parent=15 // pred_fallthru
        _
      // Predicated region
      $region25: #{raw_widar3_forward.4} parent=15 // pred_check
        %p201 = pneg %p83
      $region26: #{raw_widar3_forward.4} parent=15 // pred_check_branch
        %203 = sbr.rel (%p201) target = $region28
      $region27: #{raw_widar3_forward.4} parent=15 // pred_region
        %p204 = scmp.lt.s32.totalorder %s11, 3
        %s205 = scalar_select %p204, %s11, 3
        %s206 = scalar_lea.vmem %s2, %s205
      $region28: #{raw_widar3_forward.4} parent=15 // pred_fallthru
        _
      // Predicated region
      $region29: #{raw_widar3_forward.4} parent=15 // pred_check
        %p207 = pneg %p109
      $region30: #{raw_widar3_forward.4} parent=15 // pred_check_branch
        %209 = sbr.rel (%p207) target = $region32
      $region31: #{raw_widar3_forward.4} parent=15 // pred_region
        %p210 = scmp.lt.s32.totalorder %s11, 3
        %s211 = scalar_select %p210, %s11, 3
        %s212 = smul.addr %s211, 8
        %s213 = smul.addr %s212, 4
        %s214 = scalar_lea.vmem %s3, %s213
      $region32: #{raw_widar3_forward.4} parent=15 // pred_fallthru
        _
      // Predicated region
      $region33: #{raw_widar3_forward.4} parent=15 // pred_check
        %p215 = pneg %p135
      $region34: #{raw_widar3_forward.4} parent=15 // pred_check_branch
        %217 = sbr.rel (%p215) target = $region36
      $region35: #{raw_widar3_forward.4} parent=15 // pred_region
        %p218 = scmp.lt.s32.totalorder %s11, 3
        %s219 = scalar_select %p218, %s11, 3
        %s220 = scalar_lea.vmem %s4, %s219
      $region36: #{raw_widar3_forward.4} parent=15 // pred_fallthru
        _
    $region16: #{raw_widar3_forward.4} parent=5 // pred_fallthru
      _
    %p221 = scmp.le.s32.totalorder 1, %s11
    %p222 = scmp.lt.s32.totalorder %s11, 5
    %p223 = pnand %p221, %p222
    %p224 = pneg %p223
    // Predicated region
    $region37: #{raw_widar3_forward.4} parent=5 // pred_check
      _
    $region38: #{raw_widar3_forward.4} parent=5 // pred_check_branch
      %226 = sbr.rel (%p223) target = $region40
    $region39: #{raw_widar3_forward.4} parent=5 // pred_region
      %s227 = ssub.s32 %s11, 1
      %p228 = scmp.lt.s32.totalorder %s16, 3
      %s229 = scalar_select %p228, %s16, 3
      %s230 = smul.addr %s229, 8
      %s231 = scalar_lea.vmem %s0, %s230
      %p232 = pneg %p37
      %p233 = pneg %p34
      %p234 = scmp.lt.s32.totalorder %s16, 3
      %s235 = scalar_select %p234, %s16, 3
      %s236 = smul.addr %s235, 128
      %s237 = smul.addr %s236, 4
      %s238 = scalar_lea.vmem %s1, %s237
      %p239 = pneg %p63
      %p240 = pneg %p60
      %p241 = scmp.lt.s32.totalorder %s16, 3
      %s242 = scalar_select %p241, %s16, 3
      %s243 = scalar_lea.vmem %s2, %s242
      %p244 = pneg %p89
      %p245 = pneg %p86
      %p246 = scmp.lt.s32.totalorder %s16, 3
      %s247 = scalar_select %p246, %s16, 3
      %s248 = smul.addr %s247, 8
      %s249 = smul.addr %s248, 4
      %s250 = scalar_lea.vmem %s3, %s249
      %p251 = pneg %p115
      %p252 = pneg %p112
      %p253 = scmp.lt.s32.totalorder %s16, 3
      %s254 = scalar_select %p253, %s16, 3
      %s255 = scalar_lea.vmem %s4, %s254
      %p256 = pneg %p141
      %p257 = pneg %p138
      %p258 = pneg %p167
      %p259 = pneg %p164
      %p260 = scmp.lt.s32.totalorder %s16, 3
      %s261 = scalar_select %p260, %s16, 3
      %s262 = smul.addr %s261, 2
      %s263 = scalar_lea.vmem %s5, %s262
      %p264 = scmp.lt.s32.totalorder %s16, 3
      %s265 = scalar_select %p264, %s16, 3
      %s266 = smul.addr %s265, 8
      %s267 = scalar_lea.vmem %s0, %s266
      %p268 = scmp.lt.s32.totalorder %s16, 3
      %s269 = scalar_select %p268, %s16, 3
      %s270 = smul.addr %s269, 128
      %s271 = smul.addr %s270, 4
      %s272 = scalar_lea.vmem %s1, %s271
      %p273 = scmp.lt.s32.totalorder %s16, 3
      %s274 = scalar_select %p273, %s16, 3
      %s275 = scalar_lea.vmem %s2, %s274
      %p276 = scmp.lt.s32.totalorder %s16, 3
      %s277 = scalar_select %p276, %s16, 3
      %s278 = smul.addr %s277, 8
      %s279 = smul.addr %s278, 4
      %s280 = scalar_lea.vmem %s3, %s279
      %p281 = scmp.lt.s32.totalorder %s16, 3
      %s282 = scalar_select %p281, %s16, 3
      %s283 = scalar_lea.vmem %s4, %s282
      %p284 = scmp.lt.s32.totalorder %s16, 3
      %s285 = scalar_select %p284, %s16, 3
      %s286 = smul.addr %s285, 2
      %s287 = scalar_lea.vmem %s5, %s286
      %v289 = vld [vmem:[%s267] sm:$0xff]
      %v290 = vld [vmem:[%s272] sm:$0xf]
      %v291 = vld [vmem:[%s272 + $0x4] sm:$0xf]
      %v292 = vld [vmem:[%s272 + $0x8] sm:$0xf]
      %v293 = vld [vmem:[%s272 + $0xc] sm:$0xf]
      %v294 = vld [vmem:[%s272 + $0x10] sm:$0xf]
      %v295 = vld [vmem:[%s272 + $0x14] sm:$0xf]
      %v296 = vld [vmem:[%s272 + $0x18] sm:$0xf]
      %v297 = vld [vmem:[%s272 + $0x1c] sm:$0xf]
      %v298 = vld [vmem:[%s272 + $0x20] sm:$0xf]
      %v299 = vld [vmem:[%s272 + $0x24] sm:$0xf]
      %v300 = vld [vmem:[%s272 + $0x28] sm:$0xf]
      %v301 = vld [vmem:[%s272 + $0x2c] sm:$0xf]
      %v302 = vld [vmem:[%s272 + $0x30] sm:$0xf]
      %v303 = vld [vmem:[%s272 + $0x34] sm:$0xf]
      %v304 = vld [vmem:[%s272 + $0x38] sm:$0xf]
      %v305 = vld [vmem:[%s272 + $0x3c] sm:$0xf]
      %v306 = vld [vmem:[%s272 + $0x40] sm:$0xf]
      %v307 = vld [vmem:[%s272 + $0x44] sm:$0xf]
      %v308 = vld [vmem:[%s272 + $0x48] sm:$0xf]
      %v309 = vld [vmem:[%s272 + $0x4c] sm:$0xf]
      %v310 = vld [vmem:[%s272 + $0x50] sm:$0xf]
      %v311 = vld [vmem:[%s272 + $0x54] sm:$0xf]
      %v312 = vld [vmem:[%s272 + $0x58] sm:$0xf]
      %v313 = vld [vmem:[%s272 + $0x5c] sm:$0xf]
      %v314 = vld [vmem:[%s272 + $0x60] sm:$0xf]
      %v315 = vld [vmem:[%s272 + $0x64] sm:$0xf]
      %v316 = vld [vmem:[%s272 + $0x68] sm:$0xf]
      %v317 = vld [vmem:[%s272 + $0x6c] sm:$0xf]
      %v318 = vld [vmem:[%s272 + $0x70] sm:$0xf]
      %v319 = vld [vmem:[%s272 + $0x74] sm:$0xf]
      %v320 = vld [vmem:[%s272 + $0x78] sm:$0xf]
      %v321 = vld [vmem:[%s272 + $0x7c] sm:$0xf]
      %v322 = vld [vmem:[%s272 + $0x80] sm:$0xf]
      %v323 = vld [vmem:[%s272 + $0x84] sm:$0xf]
      %v324 = vld [vmem:[%s272 + $0x88] sm:$0xf]
      %v325 = vld [vmem:[%s272 + $0x8c] sm:$0xf]
      %v326 = vld [vmem:[%s272 + $0x90] sm:$0xf]
      %v327 = vld [vmem:[%s272 + $0x94] sm:$0xf]
      %v328 = vld [vmem:[%s272 + $0x98] sm:$0xf]
      %v329 = vld [vmem:[%s272 + $0x9c] sm:$0xf]
      %v330 = vld [vmem:[%s272 + $0xa0] sm:$0xf]
      %v331 = vld [vmem:[%s272 + $0xa4] sm:$0xf]
      %v332 = vld [vmem:[%s272 + $0xa8] sm:$0xf]
      %v333 = vld [vmem:[%s272 + $0xac] sm:$0xf]
      %v334 = vld [vmem:[%s272 + $0xb0] sm:$0xf]
      %v335 = vld [vmem:[%s272 + $0xb4] sm:$0xf]
      %v336 = vld [vmem:[%s272 + $0xb8] sm:$0xf]
      %v337 = vld [vmem:[%s272 + $0xbc] sm:$0xf]
      %v338 = vld [vmem:[%s272 + $0xc0] sm:$0xf]
      %v339 = vld [vmem:[%s272 + $0xc4] sm:$0xf]
      %v340 = vld [vmem:[%s272 + $0xc8] sm:$0xf]
      %v341 = vld [vmem:[%s272 + $0xcc] sm:$0xf]
      %v342 = vld [vmem:[%s272 + $0xd0] sm:$0xf]
      %v343 = vld [vmem:[%s272 + $0xd4] sm:$0xf]
      %v344 = vld [vmem:[%s272 + $0xd8] sm:$0xf]
      %v345 = vld [vmem:[%s272 + $0xdc] sm:$0xf]
      %v346 = vld [vmem:[%s272 + $0xe0] sm:$0xf]
      %v347 = vld [vmem:[%s272 + $0xe4] sm:$0xf]
      %v348 = vld [vmem:[%s272 + $0xe8] sm:$0xf]
      %v349 = vld [vmem:[%s272 + $0xec] sm:$0xf]
      %v350 = vld [vmem:[%s272 + $0xf0] sm:$0xf]
      %v351 = vld [vmem:[%s272 + $0xf4] sm:$0xf]
      %v352 = vld [vmem:[%s272 + $0xf8] sm:$0xf]
      %v353 = vld [vmem:[%s272 + $0xfc] sm:$0xf]
      %v354 = vld [vmem:[%s272 + $0x100] sm:$0xf]
      %v355 = vld [vmem:[%s272 + $0x104] sm:$0xf]
      %v356 = vld [vmem:[%s272 + $0x108] sm:$0xf]
      %v357 = vld [vmem:[%s272 + $0x10c] sm:$0xf]
      %v358 = vld [vmem:[%s272 + $0x110] sm:$0xf]
      %v359 = vld [vmem:[%s272 + $0x114] sm:$0xf]
      %v360 = vld [vmem:[%s272 + $0x118] sm:$0xf]
      %v361 = vld [vmem:[%s272 + $0x11c] sm:$0xf]
      %v362 = vld [vmem:[%s272 + $0x120] sm:$0xf]
      %v363 = vld [vmem:[%s272 + $0x124] sm:$0xf]
      %v364 = vld [vmem:[%s272 + $0x128] sm:$0xf]
      %v365 = vld [vmem:[%s272 + $0x12c] sm:$0xf]
      %v366 = vld [vmem:[%s272 + $0x130] sm:$0xf]
      %v367 = vld [vmem:[%s272 + $0x134] sm:$0xf]
      %v368 = vld [vmem:[%s272 + $0x138] sm:$0xf]
      %v369 = vld [vmem:[%s272 + $0x13c] sm:$0xf]
      %v370 = vld [vmem:[%s272 + $0x140] sm:$0xf]
      %v371 = vld [vmem:[%s272 + $0x144] sm:$0xf]
      %v372 = vld [vmem:[%s272 + $0x148] sm:$0xf]
      %v373 = vld [vmem:[%s272 + $0x14c] sm:$0xf]
      %v374 = vld [vmem:[%s272 + $0x150] sm:$0xf]
      %v375 = vld [vmem:[%s272 + $0x154] sm:$0xf]
      %v376 = vld [vmem:[%s272 + $0x158] sm:$0xf]
      %v377 = vld [vmem:[%s272 + $0x15c] sm:$0xf]
      %v378 = vld [vmem:[%s272 + $0x160] sm:$0xf]
      %v379 = vld [vmem:[%s272 + $0x164] sm:$0xf]
      %v380 = vld [vmem:[%s272 + $0x168] sm:$0xf]
      %v381 = vld [vmem:[%s272 + $0x16c] sm:$0xf]
      %v382 = vld [vmem:[%s272 + $0x170] sm:$0xf]
      %v383 = vld [vmem:[%s272 + $0x174] sm:$0xf]
      %v384 = vld [vmem:[%s272 + $0x178] sm:$0xf]
      %v385 = vld [vmem:[%s272 + $0x17c] sm:$0xf]
      %v386 = vld [vmem:[%s272 + $0x180] sm:$0xf]
      %v387 = vld [vmem:[%s272 + $0x184] sm:$0xf]
      %v388 = vld [vmem:[%s272 + $0x188] sm:$0xf]
      %v389 = vld [vmem:[%s272 + $0x18c] sm:$0xf]
      %v390 = vld [vmem:[%s272 + $0x190] sm:$0xf]
      %v391 = vld [vmem:[%s272 + $0x194] sm:$0xf]
      %v392 = vld [vmem:[%s272 + $0x198] sm:$0xf]
      %v393 = vld [vmem:[%s272 + $0x19c] sm:$0xf]
      %v394 = vld [vmem:[%s272 + $0x1a0] sm:$0xf]
      %v395 = vld [vmem:[%s272 + $0x1a4] sm:$0xf]
      %v396 = vld [vmem:[%s272 + $0x1a8] sm:$0xf]
      %v397 = vld [vmem:[%s272 + $0x1ac] sm:$0xf]
      %v398 = vld [vmem:[%s272 + $0x1b0] sm:$0xf]
      %v399 = vld [vmem:[%s272 + $0x1b4] sm:$0xf]
      %v400 = vld [vmem:[%s272 + $0x1b8] sm:$0xf]
      %v401 = vld [vmem:[%s272 + $0x1bc] sm:$0xf]
      %v402 = vld [vmem:[%s272 + $0x1c0] sm:$0xf]
      %v403 = vld [vmem:[%s272 + $0x1c4] sm:$0xf]
      %v404 = vld [vmem:[%s272 + $0x1c8] sm:$0xf]
      %v405 = vld [vmem:[%s272 + $0x1cc] sm:$0xf]
      %v406 = vld [vmem:[%s272 + $0x1d0] sm:$0xf]
      %v407 = vld [vmem:[%s272 + $0x1d4] sm:$0xf]
      %v408 = vld [vmem:[%s272 + $0x1d8] sm:$0xf]
      %v409 = vld [vmem:[%s272 + $0x1dc] sm:$0xf]
      %v410 = vld [vmem:[%s272 + $0x1e0] sm:$0xf]
      %v411 = vld [vmem:[%s272 + $0x1e4] sm:$0xf]
      %v412 = vld [vmem:[%s272 + $0x1e8] sm:$0xf]
      %v413 = vld [vmem:[%s272 + $0x1ec] sm:$0xf]
      %v414 = vld [vmem:[%s272 + $0x1f0] sm:$0xf]
      %v415 = vld [vmem:[%s272 + $0x1f4] sm:$0xf]
      %v416 = vld [vmem:[%s272 + $0x1f8] sm:$0xf]
      %v417 = vld [vmem:[%s272 + $0x1fc] sm:$0xf]
      %v418 = vld [vmem:[%s275] sm:$0x1]
      %v420 = vperm.slane %v418, 0
      %423 = vst [vmem:[#allocation1] ss:$9 sm:$0xff] %v289
      %v424 = vld [vmem:[#allocation1] sm:$0xff]
      %v425 = vld [vmem:[#allocation1 + $0x9] sm:$0xff]
      %v426 = vld [vmem:[#allocation1 + $0x12] sm:$0xff]
      %v427 = vld [vmem:[#allocation1 + $0x1b] sm:$0xff]
      %v428 = vld [vmem:[#allocation1 + $0x24] sm:$0xff]
      %v429 = vld [vmem:[#allocation1 + $0x2d] sm:$0xff]
      %v430 = vld [vmem:[#allocation1 + $0x36] sm:$0xff]
      %v431 = vld [vmem:[#allocation1 + $0x3f] sm:$0xff]
      %v568 = vunpack.c.l.b16 %v290
      %v569 = vunpack.c.l.b16 %v291
      %v570 = vunpack.c.l.b16 %v292
      %v571 = vunpack.c.l.b16 %v293
      %v572 = vunpack.c.l.b16 %v294
      %v573 = vunpack.c.l.b16 %v295
      %v574 = vunpack.c.l.b16 %v296
      %v575 = vunpack.c.l.b16 %v297
      %v576 = vunpack.c.l.b16 %v298
      %v577 = vunpack.c.l.b16 %v299
      %v578 = vunpack.c.l.b16 %v300
      %v579 = vunpack.c.l.b16 %v301
      %v580 = vunpack.c.l.b16 %v302
      %v581 = vunpack.c.l.b16 %v303
      %v582 = vunpack.c.l.b16 %v304
      %v583 = vunpack.c.l.b16 %v305
      %v584 = vunpack.c.l.b16 %v306
      %v585 = vunpack.c.l.b16 %v307
      %v586 = vunpack.c.l.b16 %v308
      %v587 = vunpack.c.l.b16 %v309
      %v588 = vunpack.c.l.b16 %v310
      %v589 = vunpack.c.l.b16 %v311
      %v590 = vunpack.c.l.b16 %v312
      %v591 = vunpack.c.l.b16 %v313
      %v592 = vunpack.c.l.b16 %v314
      %v593 = vunpack.c.l.b16 %v315
      %v594 = vunpack.c.l.b16 %v316
      %v595 = vunpack.c.l.b16 %v317
      %v596 = vunpack.c.l.b16 %v318
      %v597 = vunpack.c.l.b16 %v319
      %v598 = vunpack.c.l.b16 %v320
      %v599 = vunpack.c.l.b16 %v321
      %v600 = vunpack.c.l.b16 %v322
      %v601 = vunpack.c.l.b16 %v323
      %v602 = vunpack.c.l.b16 %v324
      %v603 = vunpack.c.l.b16 %v325
      %v604 = vunpack.c.l.b16 %v326
      %v605 = vunpack.c.l.b16 %v327
      %v606 = vunpack.c.l.b16 %v328
      %v607 = vunpack.c.l.b16 %v329
      %v608 = vunpack.c.l.b16 %v330
      %v609 = vunpack.c.l.b16 %v331
      %v610 = vunpack.c.l.b16 %v332
      %v611 = vunpack.c.l.b16 %v333
      %v612 = vunpack.c.l.b16 %v334
      %v613 = vunpack.c.l.b16 %v335
      %v614 = vunpack.c.l.b16 %v336
      %v615 = vunpack.c.l.b16 %v337
      %v616 = vunpack.c.l.b16 %v338
      %v617 = vunpack.c.l.b16 %v339
      %v618 = vunpack.c.l.b16 %v340
      %v619 = vunpack.c.l.b16 %v341
      %v620 = vunpack.c.l.b16 %v342
      %v621 = vunpack.c.l.b16 %v343
      %v622 = vunpack.c.l.b16 %v344
      %v623 = vunpack.c.l.b16 %v345
      %v624 = vunpack.c.l.b16 %v346
      %v625 = vunpack.c.l.b16 %v347
      %v626 = vunpack.c.l.b16 %v348
      %v627 = vunpack.c.l.b16 %v349
      %v628 = vunpack.c.l.b16 %v350
      %v629 = vunpack.c.l.b16 %v351
      %v630 = vunpack.c.l.b16 %v352
      %v631 = vunpack.c.l.b16 %v353
      %v632 = vunpack.c.l.b16 %v354
      %v633 = vunpack.c.l.b16 %v355
      %v634 = vunpack.c.l.b16 %v356
      %v635 = vunpack.c.l.b16 %v357
      %v636 = vunpack.c.l.b16 %v358
      %v637 = vunpack.c.l.b16 %v359
      %v638 = vunpack.c.l.b16 %v360
      %v639 = vunpack.c.l.b16 %v361
      %v640 = vunpack.c.l.b16 %v362
      %v641 = vunpack.c.l.b16 %v363
      %v642 = vunpack.c.l.b16 %v364
      %v643 = vunpack.c.l.b16 %v365
      %v644 = vunpack.c.l.b16 %v366
      %v645 = vunpack.c.l.b16 %v367
      %v646 = vunpack.c.l.b16 %v368
      %v647 = vunpack.c.l.b16 %v369
      %v648 = vunpack.c.l.b16 %v370
      %v649 = vunpack.c.l.b16 %v371
      %v650 = vunpack.c.l.b16 %v372
      %v651 = vunpack.c.l.b16 %v373
      %v652 = vunpack.c.l.b16 %v374
      %v653 = vunpack.c.l.b16 %v375
      %v654 = vunpack.c.l.b16 %v376
      %v655 = vunpack.c.l.b16 %v377
      %v656 = vunpack.c.l.b16 %v378
      %v657 = vunpack.c.l.b16 %v379
      %v658 = vunpack.c.l.b16 %v380
      %v659 = vunpack.c.l.b16 %v381
      %v660 = vunpack.c.l.b16 %v382
      %v661 = vunpack.c.l.b16 %v383
      %v662 = vunpack.c.l.b16 %v384
      %v663 = vunpack.c.l.b16 %v385
      %v664 = vunpack.c.l.b16 %v386
      %v665 = vunpack.c.l.b16 %v387
      %v666 = vunpack.c.l.b16 %v388
      %v667 = vunpack.c.l.b16 %v389
      %v668 = vunpack.c.l.b16 %v390
      %v669 = vunpack.c.l.b16 %v391
      %v670 = vunpack.c.l.b16 %v392
      %v671 = vunpack.c.l.b16 %v393
      %v672 = vunpack.c.l.b16 %v394
      %v673 = vunpack.c.l.b16 %v395
      %v674 = vunpack.c.l.b16 %v396
      %v675 = vunpack.c.l.b16 %v397
      %v676 = vunpack.c.l.b16 %v398
      %v677 = vunpack.c.l.b16 %v399
      %v678 = vunpack.c.l.b16 %v400
      %v679 = vunpack.c.l.b16 %v401
      %v680 = vunpack.c.l.b16 %v402
      %v681 = vunpack.c.l.b16 %v403
      %v682 = vunpack.c.l.b16 %v404
      %v683 = vunpack.c.l.b16 %v405
      %v684 = vunpack.c.l.b16 %v406
      %v685 = vunpack.c.l.b16 %v407
      %v686 = vunpack.c.l.b16 %v408
      %v687 = vunpack.c.l.b16 %v409
      %v688 = vunpack.c.l.b16 %v410
      %v689 = vunpack.c.l.b16 %v411
      %v690 = vunpack.c.l.b16 %v412
      %v691 = vunpack.c.l.b16 %v413
      %v692 = vunpack.c.l.b16 %v414
      %v693 = vunpack.c.l.b16 %v415
      %v694 = vunpack.c.l.b16 %v416
      %v695 = vunpack.c.l.b16 %v417
      %v696 = vpack.c.b16 %v569, %v568
      %v697 = vpack.c.b16 %v571, %v570
      %v698 = vpack.c.b16 %v573, %v572
      %v699 = vpack.c.b16 %v575, %v574
      %v700 = vpack.c.b16 %v577, %v576
      %v701 = vpack.c.b16 %v579, %v578
      %v702 = vpack.c.b16 %v581, %v580
      %v703 = vpack.c.b16 %v583, %v582
      %v704 = vpack.c.b16 %v585, %v584
      %v705 = vpack.c.b16 %v587, %v586
      %v706 = vpack.c.b16 %v589, %v588
      %v707 = vpack.c.b16 %v591, %v590
      %v708 = vpack.c.b16 %v593, %v592
      %v709 = vpack.c.b16 %v595, %v594
      %v710 = vpack.c.b16 %v597, %v596
      %v711 = vpack.c.b16 %v599, %v598
      %v712 = vpack.c.b16 %v601, %v600
      %v713 = vpack.c.b16 %v603, %v602
      %v714 = vpack.c.b16 %v605, %v604
      %v715 = vpack.c.b16 %v607, %v606
      %v716 = vpack.c.b16 %v609, %v608
      %v717 = vpack.c.b16 %v611, %v610
      %v718 = vpack.c.b16 %v613, %v612
      %v719 = vpack.c.b16 %v615, %v614
      %v720 = vpack.c.b16 %v617, %v616
      %v721 = vpack.c.b16 %v619, %v618
      %v722 = vpack.c.b16 %v621, %v620
      %v723 = vpack.c.b16 %v623, %v622
      %v724 = vpack.c.b16 %v625, %v624
      %v725 = vpack.c.b16 %v627, %v626
      %v726 = vpack.c.b16 %v629, %v628
      %v727 = vpack.c.b16 %v631, %v630
      %v728 = vpack.c.b16 %v633, %v632
      %v729 = vpack.c.b16 %v635, %v634
      %v730 = vpack.c.b16 %v637, %v636
      %v731 = vpack.c.b16 %v639, %v638
      %v732 = vpack.c.b16 %v641, %v640
      %v733 = vpack.c.b16 %v643, %v642
      %v734 = vpack.c.b16 %v645, %v644
      %v735 = vpack.c.b16 %v647, %v646
      %v736 = vpack.c.b16 %v649, %v648
      %v737 = vpack.c.b16 %v651, %v650
      %v738 = vpack.c.b16 %v653, %v652
      %v739 = vpack.c.b16 %v655, %v654
      %v740 = vpack.c.b16 %v657, %v656
      %v741 = vpack.c.b16 %v659, %v658
      %v742 = vpack.c.b16 %v661, %v660
      %v743 = vpack.c.b16 %v663, %v662
      %v744 = vpack.c.b16 %v665, %v664
      %v745 = vpack.c.b16 %v667, %v666
      %v746 = vpack.c.b16 %v669, %v668
      %v747 = vpack.c.b16 %v671, %v670
      %v748 = vpack.c.b16 %v673, %v672
      %v749 = vpack.c.b16 %v675, %v674
      %v750 = vpack.c.b16 %v677, %v676
      %v751 = vpack.c.b16 %v679, %v678
      %v752 = vpack.c.b16 %v681, %v680
      %v753 = vpack.c.b16 %v683, %v682
      %v754 = vpack.c.b16 %v685, %v684
      %v755 = vpack.c.b16 %v687, %v686
      %v756 = vpack.c.b16 %v689, %v688
      %v757 = vpack.c.b16 %v691, %v690
      %v758 = vpack.c.b16 %v693, %v692
      %v759 = vpack.c.b16 %v695, %v694
      %824 = vmatpush.bf16.msra.mxu0 %v703
      %825 = vmatpush.bf16.msra.mxu0 %v702
      %826 = vmatpush.bf16.msra.mxu0 %v701
      %827 = vmatpush.bf16.msra.mxu0 %v700
      %828 = vmatpush.bf16.msra.mxu0 %v699
      %829 = vmatpush.bf16.msra.mxu0 %v698
      %830 = vmatpush.bf16.msra.mxu0 %v697
      %831 = vmatpush.bf16.msra.mxu0 %v696
      %832 = vmatmul.bf16.gmra.mxu0 %v424
      %v833 = vpop.f32.mrf.mxu0
      %v834 = vadd.f32 %v420, %v833
      %v835 = vpop.f32.mrf.mxu0
      %836 = vdwg.mxu0
      %837 = vmatpush.bf16.msra.mxu0 %v711
      %838 = vmatpush.bf16.msra.mxu0 %v710
      %839 = vmatpush.bf16.msra.mxu0 %v709
      %840 = vmatpush.bf16.msra.mxu0 %v708
      %841 = vmatpush.bf16.msra.mxu0 %v707
      %842 = vmatpush.bf16.msra.mxu0 %v706
      %843 = vmatpush.bf16.msra.mxu0 %v705
      %844 = vmatpush.bf16.msra.mxu0 %v704
      %845 = vmatmul.bf16.gmra.mxu0 %v425
      %v846 = vpop.f32.mrf.mxu0
      %v847 = vadd.f32 %v834, %v846
      %v848 = vpop.f32.mrf.mxu0
      %849 = vdwg.mxu0
      %850 = vmatpush.bf16.msra.mxu0 %v719
      %851 = vmatpush.bf16.msra.mxu0 %v718
      %852 = vmatpush.bf16.msra.mxu0 %v717
      %853 = vmatpush.bf16.msra.mxu0 %v716
      %854 = vmatpush.bf16.msra.mxu0 %v715
      %855 = vmatpush.bf16.msra.mxu0 %v714
      %856 = vmatpush.bf16.msra.mxu0 %v713
      %857 = vmatpush.bf16.msra.mxu0 %v712
      %858 = vmatmul.bf16.gmra.mxu0 %v426
      %v859 = vpop.f32.mrf.mxu0
      %v860 = vadd.f32 %v847, %v859
      %v861 = vpop.f32.mrf.mxu0
      %862 = vdwg.mxu0
      %863 = vmatpush.bf16.msra.mxu0 %v727
      %864 = vmatpush.bf16.msra.mxu0 %v726
      %865 = vmatpush.bf16.msra.mxu0 %v725
      %866 = vmatpush.bf16.msra.mxu0 %v724
      %867 = vmatpush.bf16.msra.mxu0 %v723
      %868 = vmatpush.bf16.msra.mxu0 %v722
      %869 = vmatpush.bf16.msra.mxu0 %v721
      %870 = vmatpush.bf16.msra.mxu0 %v720
      %871 = vmatmul.bf16.gmra.mxu0 %v427
      %v872 = vpop.f32.mrf.mxu0
      %v873 = vadd.f32 %v860, %v872
      %v874 = vpop.f32.mrf.mxu0
      %875 = vdwg.mxu0
      %876 = vmatpush.bf16.msra.mxu0 %v735
      %877 = vmatpush.bf16.msra.mxu0 %v734
      %878 = vmatpush.bf16.msra.mxu0 %v733
      %879 = vmatpush.bf16.msra.mxu0 %v732
      %880 = vmatpush.bf16.msra.mxu0 %v731
      %881 = vmatpush.bf16.msra.mxu0 %v730
      %882 = vmatpush.bf16.msra.mxu0 %v729
      %883 = vmatpush.bf16.msra.mxu0 %v728
      %884 = vmatmul.bf16.gmra.mxu0 %v428
      %v885 = vpop.f32.mrf.mxu0
      %v886 = vadd.f32 %v873, %v885
      %v887 = vpop.f32.mrf.mxu0
      %888 = vdwg.mxu0
      %889 = vmatpush.bf16.msra.mxu0 %v743
      %890 = vmatpush.bf16.msra.mxu0 %v742
      %891 = vmatpush.bf16.msra.mxu0 %v741
      %892 = vmatpush.bf16.msra.mxu0 %v740
      %893 = vmatpush.bf16.msra.mxu0 %v739
      %894 = vmatpush.bf16.msra.mxu0 %v738
      %895 = vmatpush.bf16.msra.mxu0 %v737
      %896 = vmatpush.bf16.msra.mxu0 %v736
      %897 = vmatmul.bf16.gmra.mxu0 %v429
      %v898 = vpop.f32.mrf.mxu0
      %v899 = vadd.f32 %v886, %v898
      %v900 = vpop.f32.mrf.mxu0
      %901 = vdwg.mxu0
      %902 = vmatpush.bf16.msra.mxu0 %v751
      %903 = vmatpush.bf16.msra.mxu0 %v750
      %904 = vmatpush.bf16.msra.mxu0 %v749
      %905 = vmatpush.bf16.msra.mxu0 %v748
      %906 = vmatpush.bf16.msra.mxu0 %v747
      %907 = vmatpush.bf16.msra.mxu0 %v746
      %908 = vmatpush.bf16.msra.mxu0 %v745
      %909 = vmatpush.bf16.msra.mxu0 %v744
      %910 = vmatmul.bf16.gmra.mxu0 %v430
      %v911 = vpop.f32.mrf.mxu0
      %v912 = vadd.f32 %v899, %v911
      %v913 = vpop.f32.mrf.mxu0
      %914 = vdwg.mxu0
      %915 = vmatpush.bf16.msra.mxu0 %v759
      %916 = vmatpush.bf16.msra.mxu0 %v758
      %917 = vmatpush.bf16.msra.mxu0 %v757
      %918 = vmatpush.bf16.msra.mxu0 %v756
      %919 = vmatpush.bf16.msra.mxu0 %v755
      %920 = vmatpush.bf16.msra.mxu0 %v754
      %921 = vmatpush.bf16.msra.mxu0 %v753
      %922 = vmatpush.bf16.msra.mxu0 %v752
      %923 = vmatmul.bf16.gmra.mxu0 %v431
      %v924 = vpop.f32.mrf.mxu0
      %v925 = vadd.f32 %v912, %v924
      %v926 = vpop.f32.mrf.mxu0
      %927 = vdwg.mxu0
      %v928 = vmax.f32 %v925, 0.0
      %v929 = vpack.c.bf16 %v928, %v928
      %v930 = vld [vmem:[%s280] sm:$0xf]
      %v931 = vld [vmem:[%s280 + $0x4] sm:$0xf]
      %v932 = vld [vmem:[%s280 + $0x8] sm:$0xf]
      %v933 = vld [vmem:[%s280 + $0xc] sm:$0xf]
      %v934 = vld [vmem:[%s280 + $0x10] sm:$0xf]
      %v935 = vld [vmem:[%s280 + $0x14] sm:$0xf]
      %v936 = vld [vmem:[%s280 + $0x18] sm:$0xf]
      %v937 = vld [vmem:[%s280 + $0x1c] sm:$0xf]
      %v938 = vld [vmem:[%s283] sm:$0x1]
      %v940 = vperm.slane %v938, 0
      %v950 = vunpack.c.l.b16 %v930
      %v951 = vunpack.c.l.b16 %v931
      %v952 = vunpack.c.l.b16 %v932
      %v953 = vunpack.c.l.b16 %v933
      %v954 = vunpack.c.l.b16 %v934
      %v955 = vunpack.c.l.b16 %v935
      %v956 = vunpack.c.l.b16 %v936
      %v957 = vunpack.c.l.b16 %v937
      %v958 = vpack.c.b16 %v951, %v950
      %v959 = vpack.c.b16 %v953, %v952
      %v960 = vpack.c.b16 %v955, %v954
      %v961 = vpack.c.b16 %v957, %v956
      %vm966 = vcmask 523264
      %v968 = vsel %vm966, %v929, 0
      %970 = vmatpush.bf16.msra.mxu0 0
      %971 = vmatpush.bf16.msra.mxu0 0
      %972 = vmatpush.bf16.msra.mxu0 0
      %973 = vmatpush.bf16.msra.mxu0 0
      %974 = vmatpush.bf16.msra.mxu0 %v961
      %975 = vmatpush.bf16.msra.mxu0 %v960
      %976 = vmatpush.bf16.msra.mxu0 %v959
      %977 = vmatpush.bf16.msra.mxu0 %v958
      %978 = vmatmul.bf16.gmra.mxu0 %v968
      %v979 = vpop.f32.mrf.mxu0
      %v980 = vadd.f32 %v940, %v979
      %v981 = vpop.f32.mrf.mxu0
      %982 = vdwg.mxu0
      %v983 = vmax.f32 %v980, 0.0
      %vm984 = vcmask 517120
      %985 = vst.msk [vmem:[%s287] sm:$0x3] %vm984, %v983
      %p986 = scmp.lt.s32.totalorder %s16, 3
      %s987 = scalar_select %p986, %s16, 3
      %s988 = smul.addr %s987, 2
      %s989 = scalar_lea.vmem %s5, %s988
      // Predicated region
      $region41: #{raw_widar3_forward.4} parent=39 // pred_check
        %p990 = pneg %p164
      $region42: #{raw_widar3_forward.4} parent=39 // pred_check_branch
        %992 = sbr.rel (%p990) target = $region44
      $region43: #{raw_widar3_forward.4} parent=39 // pred_region
        _
      $region44: #{raw_widar3_forward.4} parent=39 // pred_fallthru
        _
    $region40: #{raw_widar3_forward.4} parent=5 // pred_fallthru
      _
    %p993 = scmp.le.s32.totalorder 2, %s11
    // Predicated region
    $region45: #{raw_widar3_forward.4} parent=5 // pred_check
      %p994 = pneg %p993
    $region46: #{raw_widar3_forward.4} parent=5 // pred_check_branch
      %996 = sbr.rel (%p994) target = $region48
    $region47: #{raw_widar3_forward.4} parent=5 // pred_region
      %s997 = ssub.s32 %s11, 2
      // Predicated region
      $region49: #{raw_widar3_forward.4} parent=47 // pred_check
        %p998 = pneg %p170
      $region50: #{raw_widar3_forward.4} parent=47 // pred_check_branch
        %1000 = sbr.rel (%p998) target = $region52
      $region51: #{raw_widar3_forward.4} parent=47 // pred_region
        %p1001 = scmp.lt.s32.totalorder %s17, 3
        %s1002 = scalar_select %p1001, %s17, 3
        %s1003 = smul.addr %s1002, 2
        %s1004 = scalar_lea.vmem %s5, %s1003
      $region52: #{raw_widar3_forward.4} parent=47 // pred_fallthru
        _
    $region48: #{raw_widar3_forward.4} parent=5 // pred_fallthru
      _
  $region6: #{raw_widar3_forward.4} parent=0 // loop_footer
    %s15 = sadd.s32 1, %s11
  $region7: #{raw_widar3_forward.4} parent=0 // loop_footer_branch
    %10 = sbr.rel target = $region3
  $region8: #{raw_widar3_forward.4} parent=0 // loop_exit
    _

// kernel: raw_widar3_forward.5
$region0: #{raw_widar3_forward.5}
  #allocation0 [shape = 'u32[]', space=smem, size = 0x4, offset = 0x4, fixed_abs, tag = 'smem constant byte address 0x4 - core index']
  #allocation1 [shape = 'u32[72,128]{1,0:T(1,128)}', space=vmem, size = 0x9000, scoped, tag = 'internal scratch']
  %s0 = inlined_call_operand.vmem [shape: f32[4,2,64], index: 0, kind: input, shape index: {}]
  %s1 = inlined_call_operand.vmem [shape: f32[64,384], index: 1, kind: input, shape index: {}]
  %s2 = inlined_call_operand.vmem [shape: f32[128,384], index: 2, kind: input, shape index: {}]
  %s3 = inlined_call_operand.vmem [shape: f32[1,384], index: 3, kind: input, shape index: {}]
  %s4 = inlined_call_operand.vmem [shape: f32[1,384], index: 4, kind: input, shape index: {}]
  %s5 = inlined_call_operand.vmem [shape: f32[128,6], index: 5, kind: input, shape index: {}]
  %s6 = inlined_call_operand.vmem [shape: f32[1,6], index: 6, kind: input, shape index: {}]
  %s7 = inlined_call_operand.hbm [shape: f32[2,6], index: 7, kind: output, shape index: {}]
  %s8 = sld [smem:[#allocation0]]
  $region38: #{raw_widar3_forward.5} parent=0
    _
  %s10 = ssub.s32 1, %s8
  %s11 = scalar_select 0, %s10, %s8
  $region1: #{raw_widar3_forward.5} parent=0
    #allocation2 [shape = 'u8[1024]{0}', space=vmem, size = 0x400, scoped, tag = 'output window, operand 0, single buffered']
    #allocation3 [shape = 's32[1]{0}', space=sflag, size = 0x4, scoped, tag = 'scoped memory for raw_widar3_forward.5']
    %12 = vsyncpa [#allocation3], 0
    // Predicated region
    $region2: #{raw_widar3_forward.5} parent=1 // pred_check
      _
    $region3: #{raw_widar3_forward.5} parent=1 // pred_check_branch
      %14 = sbr.rel (0) target = $region5
    $region4: #{raw_widar3_forward.5} parent=1 // pred_region
      _
    $region5: #{raw_widar3_forward.5} parent=1 // pred_fallthru
      _
    // Predicated region
    $region6: #{raw_widar3_forward.5} parent=1 // pred_check
      _
    $region7: #{raw_widar3_forward.5} parent=1 // pred_check_branch
      %16 = sbr.rel (0) target = $region9
    $region8: #{raw_widar3_forward.5} parent=1 // pred_region
      _
    $region9: #{raw_widar3_forward.5} parent=1 // pred_fallthru
      _
    // Predicated region
    $region10: #{raw_widar3_forward.5} parent=1 // pred_check
      _
    $region11: #{raw_widar3_forward.5} parent=1 // pred_check_branch
      %18 = sbr.rel (0) target = $region13
    $region12: #{raw_widar3_forward.5} parent=1 // pred_region
      _
    $region13: #{raw_widar3_forward.5} parent=1 // pred_fallthru
      _
    // Predicated region
    $region14: #{raw_widar3_forward.5} parent=1 // pred_check
      _
    $region15: #{raw_widar3_forward.5} parent=1 // pred_check_branch
      %20 = sbr.rel (0) target = $region17
    $region16: #{raw_widar3_forward.5} parent=1 // pred_region
      _
    $region17: #{raw_widar3_forward.5} parent=1 // pred_fallthru
      _
    // Predicated region
    $region18: #{raw_widar3_forward.5} parent=1 // pred_check
      _
    $region19: #{raw_widar3_forward.5} parent=1 // pred_check_branch
      %22 = sbr.rel (0) target = $region21
    $region20: #{raw_widar3_forward.5} parent=1 // pred_region
      _
    $region21: #{raw_widar3_forward.5} parent=1 // pred_fallthru
      _
    // Predicated region
    $region22: #{raw_widar3_forward.5} parent=1 // pred_check
      _
    $region23: #{raw_widar3_forward.5} parent=1 // pred_check_branch
      %24 = sbr.rel (0) target = $region25
    $region24: #{raw_widar3_forward.5} parent=1 // pred_region
      _
    $region25: #{raw_widar3_forward.5} parent=1 // pred_fallthru
      _
    // Predicated region
    $region26: #{raw_widar3_forward.5} parent=1 // pred_check
      _
    $region27: #{raw_widar3_forward.5} parent=1 // pred_check_branch
      %26 = sbr.rel (0) target = $region29
    $region28: #{raw_widar3_forward.5} parent=1 // pred_region
      _
    $region29: #{raw_widar3_forward.5} parent=1 // pred_fallthru
      _
    %v27 = vld [vmem:[%s1] sm:$0xff]
    %v28 = vld [vmem:[%s1 + $0x8] sm:$0xff]
    %v29 = vld [vmem:[%s1 + $0x10] sm:$0xff]
    %v30 = vld [vmem:[%s1 + $0x18] sm:$0xff]
    %v31 = vld [vmem:[%s1 + $0x20] sm:$0xff]
    %v32 = vld [vmem:[%s1 + $0x28] sm:$0xff]
    %v33 = vld [vmem:[%s1 + $0x30] sm:$0xff]
    %v34 = vld [vmem:[%s1 + $0x38] sm:$0xff]
    %v35 = vld [vmem:[%s1 + $0x40] sm:$0xff]
    %v36 = vld [vmem:[%s1 + $0x48] sm:$0xff]
    %v37 = vld [vmem:[%s1 + $0x50] sm:$0xff]
    %v38 = vld [vmem:[%s1 + $0x58] sm:$0xff]
    %v39 = vld [vmem:[%s1 + $0x60] sm:$0xff]
    %v40 = vld [vmem:[%s1 + $0x68] sm:$0xff]
    %v41 = vld [vmem:[%s1 + $0x70] sm:$0xff]
    %v42 = vld [vmem:[%s1 + $0x78] sm:$0xff]
    %v43 = vld [vmem:[%s1 + $0x80] sm:$0xff]
    %v44 = vld [vmem:[%s1 + $0x88] sm:$0xff]
    %v45 = vld [vmem:[%s1 + $0x90] sm:$0xff]
    %v46 = vld [vmem:[%s1 + $0x98] sm:$0xff]
    %v47 = vld [vmem:[%s1 + $0xa0] sm:$0xff]
    %v48 = vld [vmem:[%s1 + $0xa8] sm:$0xff]
    %v49 = vld [vmem:[%s1 + $0xb0] sm:$0xff]
    %v50 = vld [vmem:[%s1 + $0xb8] sm:$0xff]
    %v51 = vld [vmem:[%s2] sm:$0xff]
    %v52 = vld [vmem:[%s2 + $0x8] sm:$0xff]
    %v53 = vld [vmem:[%s2 + $0x10] sm:$0xff]
    %v54 = vld [vmem:[%s2 + $0x18] sm:$0xff]
    %v55 = vld [vmem:[%s2 + $0x20] sm:$0xff]
    %v56 = vld [vmem:[%s2 + $0x28] sm:$0xff]
    %v57 = vld [vmem:[%s2 + $0x30] sm:$0xff]
    %v58 = vld [vmem:[%s2 + $0x38] sm:$0xff]
    %v59 = vld [vmem:[%s2 + $0x40] sm:$0xff]
    %v60 = vld [vmem:[%s2 + $0x48] sm:$0xff]
    %v61 = vld [vmem:[%s2 + $0x50] sm:$0xff]
    %v62 = vld [vmem:[%s2 + $0x58] sm:$0xff]
    %v63 = vld [vmem:[%s2 + $0x60] sm:$0xff]
    %v64 = vld [vmem:[%s2 + $0x68] sm:$0xff]
    %v65 = vld [vmem:[%s2 + $0x70] sm:$0xff]
    %v66 = vld [vmem:[%s2 + $0x78] sm:$0xff]
    %v67 = vld [vmem:[%s2 + $0x80] sm:$0xff]
    %v68 = vld [vmem:[%s2 + $0x88] sm:$0xff]
    %v69 = vld [vmem:[%s2 + $0x90] sm:$0xff]
    %v70 = vld [vmem:[%s2 + $0x98] sm:$0xff]
    %v71 = vld [vmem:[%s2 + $0xa0] sm:$0xff]
    %v72 = vld [vmem:[%s2 + $0xa8] sm:$0xff]
    %v73 = vld [vmem:[%s2 + $0xb0] sm:$0xff]
    %v74 = vld [vmem:[%s2 + $0xb8] sm:$0xff]
    %v75 = vld [vmem:[%s2 + $0xc0] sm:$0xff]
    %v76 = vld [vmem:[%s2 + $0xc8] sm:$0xff]
    %v77 = vld [vmem:[%s2 + $0xd0] sm:$0xff]
    %v78 = vld [vmem:[%s2 + $0xd8] sm:$0xff]
    %v79 = vld [vmem:[%s2 + $0xe0] sm:$0xff]
    %v80 = vld [vmem:[%s2 + $0xe8] sm:$0xff]
    %v81 = vld [vmem:[%s2 + $0xf0] sm:$0xff]
    %v82 = vld [vmem:[%s2 + $0xf8] sm:$0xff]
    %v83 = vld [vmem:[%s2 + $0x100] sm:$0xff]
    %v84 = vld [vmem:[%s2 + $0x108] sm:$0xff]
    %v85 = vld [vmem:[%s2 + $0x110] sm:$0xff]
    %v86 = vld [vmem:[%s2 + $0x118] sm:$0xff]
    %v87 = vld [vmem:[%s2 + $0x120] sm:$0xff]
    %v88 = vld [vmem:[%s2 + $0x128] sm:$0xff]
    %v89 = vld [vmem:[%s2 + $0x130] sm:$0xff]
    %v90 = vld [vmem:[%s2 + $0x138] sm:$0xff]
    %v91 = vld [vmem:[%s2 + $0x140] sm:$0xff]
    %v92 = vld [vmem:[%s2 + $0x148] sm:$0xff]
    %v93 = vld [vmem:[%s2 + $0x150] sm:$0xff]
    %v94 = vld [vmem:[%s2 + $0x158] sm:$0xff]
    %v95 = vld [vmem:[%s2 + $0x160] sm:$0xff]
    %v96 = vld [vmem:[%s2 + $0x168] sm:$0xff]
    %v97 = vld [vmem:[%s2 + $0x170] sm:$0xff]
    %v98 = vld [vmem:[%s2 + $0x178] sm:$0xff]
    %v99 = vld [vmem:[%s3] sm:$0x7]
    %v100 = vld [vmem:[%s4] sm:$0x7]
    %v101 = vld [vmem:[%s0] sm:$0x3]
    %v103 = vperm.slane %v99, 0
    %v104 = vperm.slane %v99, 1
    %v105 = vperm.slane %v99, 2
    %vm109 = vcmask 523264
    %v111 = vsel %vm109, %v101, 0
    %113 = vmatpush.msra.mxu0 0.0
    %114 = vmatpush.msra.mxu0 0.0
    %115 = vmatpush.msra.mxu0 0.0
    %116 = vmatpush.msra.mxu0 0.0
    %117 = vmatpush.msra.mxu0 0.0
    %118 = vmatpush.msra.mxu0 0.0
    %119 = vmatpush.msra.mxu0 0.0
    %120 = vmatpush.msra.mxu0 0.0
    %121 = vmatpush.msra.mxu0 %v48
    %122 = vmatpush.msra.mxu0 %v45
    %123 = vmatpush.msra.mxu0 %v42
    %124 = vmatpush.msra.mxu0 %v39
    %125 = vmatpush.msra.mxu0 %v36
    %126 = vmatpush.msra.mxu0 %v33
    %127 = vmatpush.msra.mxu0 %v30
    %128 = vmatpush.msra.mxu0 %v27
    %129 = vmatmul.f32.gmra.mxu0 %v111
    %v130 = vpop.f32.mrf.mxu0
    %v131 = vadd.f32 %v103, %v130
    %132 = vdwg.mxu0
    %133 = vmatpush.msra.mxu0 0.0
    %134 = vmatpush.msra.mxu0 0.0
    %135 = vmatpush.msra.mxu0 0.0
    %136 = vmatpush.msra.mxu0 0.0
    %137 = vmatpush.msra.mxu0 0.0
    %138 = vmatpush.msra.mxu0 0.0
    %139 = vmatpush.msra.mxu0 0.0
    %140 = vmatpush.msra.mxu0 0.0
    %141 = vmatpush.msra.mxu0 %v49
    %142 = vmatpush.msra.mxu0 %v46
    %143 = vmatpush.msra.mxu0 %v43
    %144 = vmatpush.msra.mxu0 %v40
    %145 = vmatpush.msra.mxu0 %v37
    %146 = vmatpush.msra.mxu0 %v34
    %147 = vmatpush.msra.mxu0 %v31
    %148 = vmatpush.msra.mxu0 %v28
    %149 = vmatmul.f32.gmra.mxu0 %v111
    %v150 = vpop.f32.mrf.mxu0
    %v151 = vadd.f32 %v104, %v150
    %152 = vdwg.mxu0
    %153 = vmatpush.msra.mxu0 0.0
    %154 = vmatpush.msra.mxu0 0.0
    %155 = vmatpush.msra.mxu0 0.0
    %156 = vmatpush.msra.mxu0 0.0
    %157 = vmatpush.msra.mxu0 0.0
    %158 = vmatpush.msra.mxu0 0.0
    %159 = vmatpush.msra.mxu0 0.0
    %160 = vmatpush.msra.mxu0 0.0
    %161 = vmatpush.msra.mxu0 %v50
    %162 = vmatpush.msra.mxu0 %v47
    %163 = vmatpush.msra.mxu0 %v44
    %164 = vmatpush.msra.mxu0 %v41
    %165 = vmatpush.msra.mxu0 %v38
    %166 = vmatpush.msra.mxu0 %v35
    %167 = vmatpush.msra.mxu0 %v32
    %168 = vmatpush.msra.mxu0 %v29
    %169 = vmatmul.f32.gmra.mxu0 %v111
    %v170 = vpop.f32.mrf.mxu0
    %v171 = vadd.f32 %v105, %v170
    %172 = vdwg.mxu0
    %v174 = vperm.slane %v100, 0
    %v175 = vperm.slane %v100, 1
    %v176 = vperm.slane %v100, 2
    %180 = vmatpush.msra.mxu0 %v96
    %181 = vmatpush.msra.mxu0 %v93
    %182 = vmatpush.msra.mxu0 %v90
    %183 = vmatpush.msra.mxu0 %v87
    %184 = vmatpush.msra.mxu0 %v84
    %185 = vmatpush.msra.mxu0 %v81
    %186 = vmatpush.msra.mxu0 %v78
    %187 = vmatpush.msra.mxu0 %v75
    %188 = vmatpush.msra.mxu0 %v72
    %189 = vmatpush.msra.mxu0 %v69
    %190 = vmatpush.msra.mxu0 %v66
    %191 = vmatpush.msra.mxu0 %v63
    %192 = vmatpush.msra.mxu0 %v60
    %193 = vmatpush.msra.mxu0 %v57
    %194 = vmatpush.msra.mxu0 %v54
    %195 = vmatpush.msra.mxu0 %v51
    %196 = vmatmul.f32.gmra.mxu0 0.0
    %v197 = vpop.f32.mrf.mxu0
    %v198 = vadd.f32 %v174, %v197
    %199 = vdwg.mxu0
    %200 = vmatpush.msra.mxu0 %v97
    %201 = vmatpush.msra.mxu0 %v94
    %202 = vmatpush.msra.mxu0 %v91
    %203 = vmatpush.msra.mxu0 %v88
    %204 = vmatpush.msra.mxu0 %v85
    %205 = vmatpush.msra.mxu0 %v82
    %206 = vmatpush.msra.mxu0 %v79
    %207 = vmatpush.msra.mxu0 %v76
    %208 = vmatpush.msra.mxu0 %v73
    %209 = vmatpush.msra.mxu0 %v70
    %210 = vmatpush.msra.mxu0 %v67
    %211 = vmatpush.msra.mxu0 %v64
    %212 = vmatpush.msra.mxu0 %v61
    %213 = vmatpush.msra.mxu0 %v58
    %214 = vmatpush.msra.mxu0 %v55
    %215 = vmatpush.msra.mxu0 %v52
    %216 = vmatmul.f32.gmra.mxu0 0.0
    %v217 = vpop.f32.mrf.mxu0
    %v218 = vadd.f32 %v175, %v217
    %219 = vdwg.mxu0
    %220 = vmatpush.msra.mxu0 %v98
    %221 = vmatpush.msra.mxu0 %v95
    %222 = vmatpush.msra.mxu0 %v92
    %223 = vmatpush.msra.mxu0 %v89
    %224 = vmatpush.msra.mxu0 %v86
    %225 = vmatpush.msra.mxu0 %v83
    %226 = vmatpush.msra.mxu0 %v80
    %227 = vmatpush.msra.mxu0 %v77
    %228 = vmatpush.msra.mxu0 %v74
    %229 = vmatpush.msra.mxu0 %v71
    %230 = vmatpush.msra.mxu0 %v68
    %231 = vmatpush.msra.mxu0 %v65
    %232 = vmatpush.msra.mxu0 %v62
    %233 = vmatpush.msra.mxu0 %v59
    %234 = vmatpush.msra.mxu0 %v56
    %235 = vmatpush.msra.mxu0 %v53
    %236 = vmatmul.f32.gmra.mxu0 0.0
    %v237 = vpop.f32.mrf.mxu0
    %v238 = vadd.f32 %v176, %v237
    %239 = vdwg.mxu0
    %v240 = vadd.f32 %v131, %v198
    %v241 = vxor.u32 %v240, 2147483648
    %v242 = vmul.f32 %v241, 1.442695
    %v243 = vpow.pop %v242
    %v244 = vadd.f32 %v243, 1.0
    %v245 = vrcp.pop %v244
    %v246 = vmul.f32 %v244, %v245
    %v247 = vsub.f32 1.0, %v246
    %v248 = vmul.f32 %v245, %v247
    %v249 = vadd.f32 %v245, %v248
    %vm250 = vweird.f32 %v244
    %vm251 = vweird.f32 %v245
    %vm252 = vmor %vm250, %vm251
    %v253 = vsel %vm252, %v245, %v249
    %v254 = vand.u32 2147483647, %v244
    %vm255 = vcmp.eq.f32.partialorder %v254, 8.507059e+37
    %v256 = vand.u32 %v244, 2147483648
    %v257 = vor.u32 1.1754944e-38, %v256
    %v258 = vsel %vm255, %v257, %v253
    %v259 = vmul.f32 1.0, %v258
    %v260 = vadd.f32 %v151, %v218
    %v261 = vxor.u32 %v260, 2147483648
    %v262 = vmul.f32 %v261, 1.442695
    %v263 = vpow.pop %v262
    %v264 = vadd.f32 %v263, 1.0
    %v265 = vrcp.pop %v264
    %v266 = vmul.f32 %v264, %v265
    %v267 = vsub.f32 1.0, %v266
    %v268 = vmul.f32 %v265, %v267
    %v269 = vadd.f32 %v265, %v268
    %vm270 = vweird.f32 %v264
    %vm271 = vweird.f32 %v265
    %vm272 = vmor %vm270, %vm271
    %v273 = vsel %vm272, %v265, %v269
    %v274 = vand.u32 2147483647, %v264
    %vm275 = vcmp.eq.f32.partialorder %v274, 8.507059e+37
    %v276 = vand.u32 %v264, 2147483648
    %v277 = vor.u32 1.1754944e-38, %v276
    %v278 = vsel %vm275, %v277, %v273
    %v279 = vmul.f32 1.0, %v278
    %v280 = vmul.f32 %v259, %v238
    %v281 = vadd.f32 %v171, %v280
    %v282 = vtanh.pop %v281
    %v283 = vsub.f32 1.0, %v279
    %v284 = vmul.f32 %v283, %v282
    %v285 = vmul.f32 %v279, 0.0
    %v286 = vadd.f32 %v284, %v285
    %s287 = scalar_lea.vmem %s0, 2
    %v288 = vld [vmem:[%s287] sm:$0x3]
    %v290 = vsel %vm109, %v288, 0
    %292 = vmatpush.msra.mxu0 0.0
    %293 = vmatpush.msra.mxu0 0.0
    %294 = vmatpush.msra.mxu0 0.0
    %295 = vmatpush.msra.mxu0 0.0
    %296 = vmatpush.msra.mxu0 0.0
    %297 = vmatpush.msra.mxu0 0.0
    %298 = vmatpush.msra.mxu0 0.0
    %299 = vmatpush.msra.mxu0 0.0
    %300 = vmatpush.msra.mxu0 %v48
    %301 = vmatpush.msra.mxu0 %v45
    %302 = vmatpush.msra.mxu0 %v42
    %303 = vmatpush.msra.mxu0 %v39
    %304 = vmatpush.msra.mxu0 %v36
    %305 = vmatpush.msra.mxu0 %v33
    %306 = vmatpush.msra.mxu0 %v30
    %307 = vmatpush.msra.mxu0 %v27
    %308 = vmatmul.f32.gmra.mxu0 %v290
    %v309 = vpop.f32.mrf.mxu0
    %v310 = vadd.f32 %v103, %v309
    %311 = vdwg.mxu0
    %312 = vmatpush.msra.mxu0 0.0
    %313 = vmatpush.msra.mxu0 0.0
    %314 = vmatpush.msra.mxu0 0.0
    %315 = vmatpush.msra.mxu0 0.0
    %316 = vmatpush.msra.mxu0 0.0
    %317 = vmatpush.msra.mxu0 0.0
    %318 = vmatpush.msra.mxu0 0.0
    %319 = vmatpush.msra.mxu0 0.0
    %320 = vmatpush.msra.mxu0 %v49
    %321 = vmatpush.msra.mxu0 %v46
    %322 = vmatpush.msra.mxu0 %v43
    %323 = vmatpush.msra.mxu0 %v40
    %324 = vmatpush.msra.mxu0 %v37
    %325 = vmatpush.msra.mxu0 %v34
    %326 = vmatpush.msra.mxu0 %v31
    %327 = vmatpush.msra.mxu0 %v28
    %328 = vmatmul.f32.gmra.mxu0 %v290
    %v329 = vpop.f32.mrf.mxu0
    %v330 = vadd.f32 %v104, %v329
    %331 = vdwg.mxu0
    %332 = vmatpush.msra.mxu0 0.0
    %333 = vmatpush.msra.mxu0 0.0
    %334 = vmatpush.msra.mxu0 0.0
    %335 = vmatpush.msra.mxu0 0.0
    %336 = vmatpush.msra.mxu0 0.0
    %337 = vmatpush.msra.mxu0 0.0
    %338 = vmatpush.msra.mxu0 0.0
    %339 = vmatpush.msra.mxu0 0.0
    %340 = vmatpush.msra.mxu0 %v50
    %341 = vmatpush.msra.mxu0 %v47
    %342 = vmatpush.msra.mxu0 %v44
    %343 = vmatpush.msra.mxu0 %v41
    %344 = vmatpush.msra.mxu0 %v38
    %345 = vmatpush.msra.mxu0 %v35
    %346 = vmatpush.msra.mxu0 %v32
    %347 = vmatpush.msra.mxu0 %v29
    %348 = vmatmul.f32.gmra.mxu0 %v290
    %v349 = vpop.f32.mrf.mxu0
    %v350 = vadd.f32 %v105, %v349
    %351 = vdwg.mxu0
    %352 = vmatpush.msra.mxu0 %v96
    %353 = vmatpush.msra.mxu0 %v93
    %354 = vmatpush.msra.mxu0 %v90
    %355 = vmatpush.msra.mxu0 %v87
    %356 = vmatpush.msra.mxu0 %v84
    %357 = vmatpush.msra.mxu0 %v81
    %358 = vmatpush.msra.mxu0 %v78
    %359 = vmatpush.msra.mxu0 %v75
    %360 = vmatpush.msra.mxu0 %v72
    %361 = vmatpush.msra.mxu0 %v69
    %362 = vmatpush.msra.mxu0 %v66
    %363 = vmatpush.msra.mxu0 %v63
    %364 = vmatpush.msra.mxu0 %v60
    %365 = vmatpush.msra.mxu0 %v57
    %366 = vmatpush.msra.mxu0 %v54
    %367 = vmatpush.msra.mxu0 %v51
    %368 = vmatmul.f32.gmra.mxu0 %v286
    %v369 = vpop.f32.mrf.mxu0
    %v370 = vadd.f32 %v174, %v369
    %371 = vdwg.mxu0
    %372 = vmatpush.msra.mxu0 %v97
    %373 = vmatpush.msra.mxu0 %v94
    %374 = vmatpush.msra.mxu0 %v91
    %375 = vmatpush.msra.mxu0 %v88
    %376 = vmatpush.msra.mxu0 %v85
    %377 = vmatpush.msra.mxu0 %v82
    %378 = vmatpush.msra.mxu0 %v79
    %379 = vmatpush.msra.mxu0 %v76
    %380 = vmatpush.msra.mxu0 %v73
    %381 = vmatpush.msra.mxu0 %v70
    %382 = vmatpush.msra.mxu0 %v67
    %383 = vmatpush.msra.mxu0 %v64
    %384 = vmatpush.msra.mxu0 %v61
    %385 = vmatpush.msra.mxu0 %v58
    %386 = vmatpush.msra.mxu0 %v55
    %387 = vmatpush.msra.mxu0 %v52
    %388 = vmatmul.f32.gmra.mxu0 %v286
    %v389 = vpop.f32.mrf.mxu0
    %v390 = vadd.f32 %v175, %v389
    %391 = vdwg.mxu0
    %392 = vmatpush.msra.mxu0 %v98
    %393 = vmatpush.msra.mxu0 %v95
    %394 = vmatpush.msra.mxu0 %v92
    %395 = vmatpush.msra.mxu0 %v89
    %396 = vmatpush.msra.mxu0 %v86
    %397 = vmatpush.msra.mxu0 %v83
    %398 = vmatpush.msra.mxu0 %v80
    %399 = vmatpush.msra.mxu0 %v77
    %400 = vmatpush.msra.mxu0 %v74
    %401 = vmatpush.msra.mxu0 %v71
    %402 = vmatpush.msra.mxu0 %v68
    %403 = vmatpush.msra.mxu0 %v65
    %404 = vmatpush.msra.mxu0 %v62
    %405 = vmatpush.msra.mxu0 %v59
    %406 = vmatpush.msra.mxu0 %v56
    %407 = vmatpush.msra.mxu0 %v53
    %408 = vmatmul.f32.gmra.mxu0 %v286
    %v409 = vpop.f32.mrf.mxu0
    %v410 = vadd.f32 %v176, %v409
    %411 = vdwg.mxu0
    %v412 = vadd.f32 %v310, %v370
    %v413 = vxor.u32 %v412, 2147483648
    %v414 = vmul.f32 %v413, 1.442695
    %v415 = vpow.pop %v414
    %v416 = vadd.f32 %v415, 1.0
    %v417 = vrcp.pop %v416
    %v418 = vmul.f32 %v416, %v417
    %v419 = vsub.f32 1.0, %v418
    %v420 = vmul.f32 %v417, %v419
    %v421 = vadd.f32 %v417, %v420
    %vm422 = vweird.f32 %v416
    %vm423 = vweird.f32 %v417
    %vm424 = vmor %vm422, %vm423
    %v425 = vsel %vm424, %v417, %v421
    %v426 = vand.u32 2147483647, %v416
    %vm427 = vcmp.eq.f32.partialorder %v426, 8.507059e+37
    %v428 = vand.u32 %v416, 2147483648
    %v429 = vor.u32 1.1754944e-38, %v428
    %v430 = vsel %vm427, %v429, %v425
    %v431 = vmul.f32 1.0, %v430
    %v432 = vadd.f32 %v330, %v390
    %v433 = vxor.u32 %v432, 2147483648
    %v434 = vmul.f32 %v433, 1.442695
    %v435 = vpow.pop %v434
    %v436 = vadd.f32 %v435, 1.0
    %v437 = vrcp.pop %v436
    %v438 = vmul.f32 %v436, %v437
    %v439 = vsub.f32 1.0, %v438
    %v440 = vmul.f32 %v437, %v439
    %v441 = vadd.f32 %v437, %v440
    %vm442 = vweird.f32 %v436
    %vm443 = vweird.f32 %v437
    %vm444 = vmor %vm442, %vm443
    %v445 = vsel %vm444, %v437, %v441
    %v446 = vand.u32 2147483647, %v436
    %vm447 = vcmp.eq.f32.partialorder %v446, 8.507059e+37
    %v448 = vand.u32 %v436, 2147483648
    %v449 = vor.u32 1.1754944e-38, %v448
    %v450 = vsel %vm447, %v449, %v445
    %v451 = vmul.f32 1.0, %v450
    %v452 = vmul.f32 %v431, %v410
    %v453 = vadd.f32 %v350, %v452
    %v454 = vtanh.pop %v453
    %v455 = vsub.f32 1.0, %v451
    %v456 = vmul.f32 %v455, %v454
    %v457 = vmul.f32 %v451, %v286
    %v458 = vadd.f32 %v456, %v457
    %s459 = scalar_lea.vmem %s0, 4
    %v460 = vld [vmem:[%s459] sm:$0x3]
    %v462 = vsel %vm109, %v460, 0
    %464 = vmatpush.msra.mxu0 0.0
    %465 = vmatpush.msra.mxu0 0.0
    %466 = vmatpush.msra.mxu0 0.0
    %467 = vmatpush.msra.mxu0 0.0
    %468 = vmatpush.msra.mxu0 0.0
    %469 = vmatpush.msra.mxu0 0.0
    %470 = vmatpush.msra.mxu0 0.0
    %471 = vmatpush.msra.mxu0 0.0
    %472 = vmatpush.msra.mxu0 %v48
    %473 = vmatpush.msra.mxu0 %v45
    %474 = vmatpush.msra.mxu0 %v42
    %475 = vmatpush.msra.mxu0 %v39
    %476 = vmatpush.msra.mxu0 %v36
    %477 = vmatpush.msra.mxu0 %v33
    %478 = vmatpush.msra.mxu0 %v30
    %479 = vmatpush.msra.mxu0 %v27
    %480 = vmatmul.f32.gmra.mxu0 %v462
    %v481 = vpop.f32.mrf.mxu0
    %v482 = vadd.f32 %v103, %v481
    %483 = vdwg.mxu0
    %484 = vmatpush.msra.mxu0 0.0
    %485 = vmatpush.msra.mxu0 0.0
    %486 = vmatpush.msra.mxu0 0.0
    %487 = vmatpush.msra.mxu0 0.0
    %488 = vmatpush.msra.mxu0 0.0
    %489 = vmatpush.msra.mxu0 0.0
    %490 = vmatpush.msra.mxu0 0.0
    %491 = vmatpush.msra.mxu0 0.0
    %492 = vmatpush.msra.mxu0 %v49
    %493 = vmatpush.msra.mxu0 %v46
    %494 = vmatpush.msra.mxu0 %v43
    %495 = vmatpush.msra.mxu0 %v40
    %496 = vmatpush.msra.mxu0 %v37
    %497 = vmatpush.msra.mxu0 %v34
    %498 = vmatpush.msra.mxu0 %v31
    %499 = vmatpush.msra.mxu0 %v28
    %500 = vmatmul.f32.gmra.mxu0 %v462
    %v501 = vpop.f32.mrf.mxu0
    %v502 = vadd.f32 %v104, %v501
    %503 = vdwg.mxu0
    %504 = vmatpush.msra.mxu0 0.0
    %505 = vmatpush.msra.mxu0 0.0
    %506 = vmatpush.msra.mxu0 0.0
    %507 = vmatpush.msra.mxu0 0.0
    %508 = vmatpush.msra.mxu0 0.0
    %509 = vmatpush.msra.mxu0 0.0
    %510 = vmatpush.msra.mxu0 0.0
    %511 = vmatpush.msra.mxu0 0.0
    %512 = vmatpush.msra.mxu0 %v50
    %513 = vmatpush.msra.mxu0 %v47
    %514 = vmatpush.msra.mxu0 %v44
    %515 = vmatpush.msra.mxu0 %v41
    %516 = vmatpush.msra.mxu0 %v38
    %517 = vmatpush.msra.mxu0 %v35
    %518 = vmatpush.msra.mxu0 %v32
    %519 = vmatpush.msra.mxu0 %v29
    %520 = vmatmul.f32.gmra.mxu0 %v462
    %v521 = vpop.f32.mrf.mxu0
    %v522 = vadd.f32 %v105, %v521
    %523 = vdwg.mxu0
    %524 = vmatpush.msra.mxu0 %v96
    %525 = vmatpush.msra.mxu0 %v93
    %526 = vmatpush.msra.mxu0 %v90
    %527 = vmatpush.msra.mxu0 %v87
    %528 = vmatpush.msra.mxu0 %v84
    %529 = vmatpush.msra.mxu0 %v81
    %530 = vmatpush.msra.mxu0 %v78
    %531 = vmatpush.msra.mxu0 %v75
    %532 = vmatpush.msra.mxu0 %v72
    %533 = vmatpush.msra.mxu0 %v69
    %534 = vmatpush.msra.mxu0 %v66
    %535 = vmatpush.msra.mxu0 %v63
    %536 = vmatpush.msra.mxu0 %v60
    %537 = vmatpush.msra.mxu0 %v57
    %538 = vmatpush.msra.mxu0 %v54
    %539 = vmatpush.msra.mxu0 %v51
    %540 = vmatmul.f32.gmra.mxu0 %v458
    %v541 = vpop.f32.mrf.mxu0
    %v542 = vadd.f32 %v174, %v541
    %543 = vdwg.mxu0
    %544 = vmatpush.msra.mxu0 %v97
    %545 = vmatpush.msra.mxu0 %v94
    %546 = vmatpush.msra.mxu0 %v91
    %547 = vmatpush.msra.mxu0 %v88
    %548 = vmatpush.msra.mxu0 %v85
    %549 = vmatpush.msra.mxu0 %v82
    %550 = vmatpush.msra.mxu0 %v79
    %551 = vmatpush.msra.mxu0 %v76
    %552 = vmatpush.msra.mxu0 %v73
    %553 = vmatpush.msra.mxu0 %v70
    %554 = vmatpush.msra.mxu0 %v67
    %555 = vmatpush.msra.mxu0 %v64
    %556 = vmatpush.msra.mxu0 %v61
    %557 = vmatpush.msra.mxu0 %v58
    %558 = vmatpush.msra.mxu0 %v55
    %559 = vmatpush.msra.mxu0 %v52
    %560 = vmatmul.f32.gmra.mxu0 %v458
    %v561 = vpop.f32.mrf.mxu0
    %v562 = vadd.f32 %v175, %v561
    %563 = vdwg.mxu0
    %564 = vmatpush.msra.mxu0 %v98
    %565 = vmatpush.msra.mxu0 %v95
    %566 = vmatpush.msra.mxu0 %v92
    %567 = vmatpush.msra.mxu0 %v89
    %568 = vmatpush.msra.mxu0 %v86
    %569 = vmatpush.msra.mxu0 %v83
    %570 = vmatpush.msra.mxu0 %v80
    %571 = vmatpush.msra.mxu0 %v77
    %572 = vmatpush.msra.mxu0 %v74
    %573 = vmatpush.msra.mxu0 %v71
    %574 = vmatpush.msra.mxu0 %v68
    %575 = vmatpush.msra.mxu0 %v65
    %576 = vmatpush.msra.mxu0 %v62
    %577 = vmatpush.msra.mxu0 %v59
    %578 = vmatpush.msra.mxu0 %v56
    %579 = vmatpush.msra.mxu0 %v53
    %580 = vmatmul.f32.gmra.mxu0 %v458
    %v581 = vpop.f32.mrf.mxu0
    %v582 = vadd.f32 %v176, %v581
    %583 = vdwg.mxu0
    %v584 = vadd.f32 %v482, %v542
    %v585 = vxor.u32 %v584, 2147483648
    %v586 = vmul.f32 %v585, 1.442695
    %v587 = vpow.pop %v586
    %v588 = vadd.f32 %v587, 1.0
    %v589 = vrcp.pop %v588
    %v590 = vmul.f32 %v588, %v589
    %v591 = vsub.f32 1.0, %v590
    %v592 = vmul.f32 %v589, %v591
    %v593 = vadd.f32 %v589, %v592
    %vm594 = vweird.f32 %v588
    %vm595 = vweird.f32 %v589
    %vm596 = vmor %vm594, %vm595
    %v597 = vsel %vm596, %v589, %v593
    %v598 = vand.u32 2147483647, %v588
    %vm599 = vcmp.eq.f32.partialorder %v598, 8.507059e+37
    %v600 = vand.u32 %v588, 2147483648
    %v601 = vor.u32 1.1754944e-38, %v600
    %v602 = vsel %vm599, %v601, %v597
    %v603 = vmul.f32 1.0, %v602
    %v604 = vadd.f32 %v502, %v562
    %v605 = vxor.u32 %v604, 2147483648
    %v606 = vmul.f32 %v605, 1.442695
    %v607 = vpow.pop %v606
    %v608 = vadd.f32 %v607, 1.0
    %v609 = vrcp.pop %v608
    %v610 = vmul.f32 %v608, %v609
    %v611 = vsub.f32 1.0, %v610
    %v612 = vmul.f32 %v609, %v611
    %v613 = vadd.f32 %v609, %v612
    %vm614 = vweird.f32 %v608
    %vm615 = vweird.f32 %v609
    %vm616 = vmor %vm614, %vm615
    %v617 = vsel %vm616, %v609, %v613
    %v618 = vand.u32 2147483647, %v608
    %vm619 = vcmp.eq.f32.partialorder %v618, 8.507059e+37
    %v620 = vand.u32 %v608, 2147483648
    %v621 = vor.u32 1.1754944e-38, %v620
    %v622 = vsel %vm619, %v621, %v617
    %v623 = vmul.f32 1.0, %v622
    %v624 = vmul.f32 %v603, %v582
    %v625 = vadd.f32 %v522, %v624
    %v626 = vtanh.pop %v625
    %v627 = vsub.f32 1.0, %v623
    %v628 = vmul.f32 %v627, %v626
    %v629 = vmul.f32 %v623, %v458
    %v630 = vadd.f32 %v628, %v629
    %s631 = scalar_lea.vmem %s0, 6
    %v632 = vld [vmem:[%s631] sm:$0x3]
    %v634 = vsel %vm109, %v632, 0
    %636 = vmatpush.msra.mxu0 0.0
    %637 = vmatpush.msra.mxu0 0.0
    %638 = vmatpush.msra.mxu0 0.0
    %639 = vmatpush.msra.mxu0 0.0
    %640 = vmatpush.msra.mxu0 0.0
    %641 = vmatpush.msra.mxu0 0.0
    %642 = vmatpush.msra.mxu0 0.0
    %643 = vmatpush.msra.mxu0 0.0
    %644 = vmatpush.msra.mxu0 %v48
    %645 = vmatpush.msra.mxu0 %v45
    %646 = vmatpush.msra.mxu0 %v42
    %647 = vmatpush.msra.mxu0 %v39
    %648 = vmatpush.msra.mxu0 %v36
    %649 = vmatpush.msra.mxu0 %v33
    %650 = vmatpush.msra.mxu0 %v30
    %651 = vmatpush.msra.mxu0 %v27
    %652 = vmatmul.f32.gmra.mxu0 %v634
    %v653 = vpop.f32.mrf.mxu0
    %v654 = vadd.f32 %v103, %v653
    %655 = vdwg.mxu0
    %656 = vmatpush.msra.mxu0 0.0
    %657 = vmatpush.msra.mxu0 0.0
    %658 = vmatpush.msra.mxu0 0.0
    %659 = vmatpush.msra.mxu0 0.0
    %660 = vmatpush.msra.mxu0 0.0
    %661 = vmatpush.msra.mxu0 0.0
    %662 = vmatpush.msra.mxu0 0.0
    %663 = vmatpush.msra.mxu0 0.0
    %664 = vmatpush.msra.mxu0 %v49
    %665 = vmatpush.msra.mxu0 %v46
    %666 = vmatpush.msra.mxu0 %v43
    %667 = vmatpush.msra.mxu0 %v40
    %668 = vmatpush.msra.mxu0 %v37
    %669 = vmatpush.msra.mxu0 %v34
    %670 = vmatpush.msra.mxu0 %v31
    %671 = vmatpush.msra.mxu0 %v28
    %672 = vmatmul.f32.gmra.mxu0 %v634
    %v673 = vpop.f32.mrf.mxu0
    %v674 = vadd.f32 %v104, %v673
    %675 = vdwg.mxu0
    %676 = vmatpush.msra.mxu0 0.0
    %677 = vmatpush.msra.mxu0 0.0
    %678 = vmatpush.msra.mxu0 0.0
    %679 = vmatpush.msra.mxu0 0.0
    %680 = vmatpush.msra.mxu0 0.0
    %681 = vmatpush.msra.mxu0 0.0
    %682 = vmatpush.msra.mxu0 0.0
    %683 = vmatpush.msra.mxu0 0.0
    %684 = vmatpush.msra.mxu0 %v50
    %685 = vmatpush.msra.mxu0 %v47
    %686 = vmatpush.msra.mxu0 %v44
    %687 = vmatpush.msra.mxu0 %v41
    %688 = vmatpush.msra.mxu0 %v38
    %689 = vmatpush.msra.mxu0 %v35
    %690 = vmatpush.msra.mxu0 %v32
    %691 = vmatpush.msra.mxu0 %v29
    %692 = vmatmul.f32.gmra.mxu0 %v634
    %v693 = vpop.f32.mrf.mxu0
    %v694 = vadd.f32 %v105, %v693
    %695 = vdwg.mxu0
    %696 = vmatpush.msra.mxu0 %v96
    %697 = vmatpush.msra.mxu0 %v93
    %698 = vmatpush.msra.mxu0 %v90
    %699 = vmatpush.msra.mxu0 %v87
    %700 = vmatpush.msra.mxu0 %v84
    %701 = vmatpush.msra.mxu0 %v81
    %702 = vmatpush.msra.mxu0 %v78
    %703 = vmatpush.msra.mxu0 %v75
    %704 = vmatpush.msra.mxu0 %v72
    %705 = vmatpush.msra.mxu0 %v69
    %706 = vmatpush.msra.mxu0 %v66
    %707 = vmatpush.msra.mxu0 %v63
    %708 = vmatpush.msra.mxu0 %v60
    %709 = vmatpush.msra.mxu0 %v57
    %710 = vmatpush.msra.mxu0 %v54
    %711 = vmatpush.msra.mxu0 %v51
    %712 = vmatmul.f32.gmra.mxu0 %v630
    %v713 = vpop.f32.mrf.mxu0
    %v714 = vadd.f32 %v174, %v713
    %715 = vdwg.mxu0
    %716 = vmatpush.msra.mxu0 %v97
    %717 = vmatpush.msra.mxu0 %v94
    %718 = vmatpush.msra.mxu0 %v91
    %719 = vmatpush.msra.mxu0 %v88
    %720 = vmatpush.msra.mxu0 %v85
    %721 = vmatpush.msra.mxu0 %v82
    %722 = vmatpush.msra.mxu0 %v79
    %723 = vmatpush.msra.mxu0 %v76
    %724 = vmatpush.msra.mxu0 %v73
    %725 = vmatpush.msra.mxu0 %v70
    %726 = vmatpush.msra.mxu0 %v67
    %727 = vmatpush.msra.mxu0 %v64
    %728 = vmatpush.msra.mxu0 %v61
    %729 = vmatpush.msra.mxu0 %v58
    %730 = vmatpush.msra.mxu0 %v55
    %731 = vmatpush.msra.mxu0 %v52
    %732 = vmatmul.f32.gmra.mxu0 %v630
    %v733 = vpop.f32.mrf.mxu0
    %v734 = vadd.f32 %v175, %v733
    %735 = vdwg.mxu0
    %736 = vmatpush.msra.mxu0 %v98
    %737 = vmatpush.msra.mxu0 %v95
    %738 = vmatpush.msra.mxu0 %v92
    %739 = vmatpush.msra.mxu0 %v89
    %740 = vmatpush.msra.mxu0 %v86
    %741 = vmatpush.msra.mxu0 %v83
    %742 = vmatpush.msra.mxu0 %v80
    %743 = vmatpush.msra.mxu0 %v77
    %744 = vmatpush.msra.mxu0 %v74
    %745 = vmatpush.msra.mxu0 %v71
    %746 = vmatpush.msra.mxu0 %v68
    %747 = vmatpush.msra.mxu0 %v65
    %748 = vmatpush.msra.mxu0 %v62
    %749 = vmatpush.msra.mxu0 %v59
    %750 = vmatpush.msra.mxu0 %v56
    %751 = vmatpush.msra.mxu0 %v53
    %752 = vmatmul.f32.gmra.mxu0 %v630
    %v753 = vpop.f32.mrf.mxu0
    %v754 = vadd.f32 %v176, %v753
    %755 = vdwg.mxu0
    %v756 = vadd.f32 %v654, %v714
    %v757 = vxor.u32 %v756, 2147483648
    %v758 = vmul.f32 %v757, 1.442695
    %v759 = vpow.pop %v758
    %v760 = vadd.f32 %v759, 1.0
    %v761 = vrcp.pop %v760
    %v762 = vmul.f32 %v760, %v761
    %v763 = vsub.f32 1.0, %v762
    %v764 = vmul.f32 %v761, %v763
    %v765 = vadd.f32 %v761, %v764
    %vm766 = vweird.f32 %v760
    %vm767 = vweird.f32 %v761
    %vm768 = vmor %vm766, %vm767
    %v769 = vsel %vm768, %v761, %v765
    %v770 = vand.u32 2147483647, %v760
    %vm771 = vcmp.eq.f32.partialorder %v770, 8.507059e+37
    %v772 = vand.u32 %v760, 2147483648
    %v773 = vor.u32 1.1754944e-38, %v772
    %v774 = vsel %vm771, %v773, %v769
    %v775 = vmul.f32 1.0, %v774
    %v776 = vadd.f32 %v674, %v734
    %v777 = vxor.u32 %v776, 2147483648
    %v778 = vmul.f32 %v777, 1.442695
    %v779 = vpow.pop %v778
    %v780 = vadd.f32 %v779, 1.0
    %v781 = vrcp.pop %v780
    %v782 = vmul.f32 %v780, %v781
    %v783 = vsub.f32 1.0, %v782
    %v784 = vmul.f32 %v781, %v783
    %v785 = vadd.f32 %v781, %v784
    %vm786 = vweird.f32 %v780
    %vm787 = vweird.f32 %v781
    %vm788 = vmor %vm786, %vm787
    %v789 = vsel %vm788, %v781, %v785
    %v790 = vand.u32 2147483647, %v780
    %vm791 = vcmp.eq.f32.partialorder %v790, 8.507059e+37
    %v792 = vand.u32 %v780, 2147483648
    %v793 = vor.u32 1.1754944e-38, %v792
    %v794 = vsel %vm791, %v793, %v789
    %v795 = vmul.f32 1.0, %v794
    %v796 = vmul.f32 %v775, %v754
    %v797 = vadd.f32 %v694, %v796
    %v798 = vtanh.pop %v797
    %v799 = vsub.f32 1.0, %v795
    %v800 = vmul.f32 %v799, %v798
    %v801 = vmul.f32 %v795, %v630
    %v802 = vadd.f32 %v800, %v801
    %v803 = vld [vmem:[%s5] sm:$0xff]
    %v804 = vld [vmem:[%s5 + $0x8] sm:$0xff]
    %v805 = vld [vmem:[%s5 + $0x10] sm:$0xff]
    %v806 = vld [vmem:[%s5 + $0x18] sm:$0xff]
    %v807 = vld [vmem:[%s5 + $0x20] sm:$0xff]
    %v808 = vld [vmem:[%s5 + $0x28] sm:$0xff]
    %v809 = vld [vmem:[%s5 + $0x30] sm:$0xff]
    %v810 = vld [vmem:[%s5 + $0x38] sm:$0xff]
    %v811 = vld [vmem:[%s5 + $0x40] sm:$0xff]
    %v812 = vld [vmem:[%s5 + $0x48] sm:$0xff]
    %v813 = vld [vmem:[%s5 + $0x50] sm:$0xff]
    %v814 = vld [vmem:[%s5 + $0x58] sm:$0xff]
    %v815 = vld [vmem:[%s5 + $0x60] sm:$0xff]
    %v816 = vld [vmem:[%s5 + $0x68] sm:$0xff]
    %v817 = vld [vmem:[%s5 + $0x70] sm:$0xff]
    %v818 = vld [vmem:[%s5 + $0x78] sm:$0xff]
    %v819 = vld [vmem:[%s6] sm:$0x1]
    %v821 = vperm.slane %v819, 0
    %823 = vmatpush.msra.mxu0 %v818
    %824 = vmatpush.msra.mxu0 %v817
    %825 = vmatpush.msra.mxu0 %v816
    %826 = vmatpush.msra.mxu0 %v815
    %827 = vmatpush.msra.mxu0 %v814
    %828 = vmatpush.msra.mxu0 %v813
    %829 = vmatpush.msra.mxu0 %v812
    %830 = vmatpush.msra.mxu0 %v811
    %831 = vmatpush.msra.mxu0 %v810
    %832 = vmatpush.msra.mxu0 %v809
    %833 = vmatpush.msra.mxu0 %v808
    %834 = vmatpush.msra.mxu0 %v807
    %835 = vmatpush.msra.mxu0 %v806
    %836 = vmatpush.msra.mxu0 %v805
    %837 = vmatpush.msra.mxu0 %v804
    %838 = vmatpush.msra.mxu0 %v803
    %839 = vmatmul.f32.gmra.mxu0 %v802
    %v840 = vpop.f32.mrf.mxu0
    %v841 = vadd.f32 %v821, %v840
    %842 = vdwg.mxu0
    %vm843 = vcmask 41984
    %844 = vst.msk [vmem:[#allocation2] sm:$0x3] %vm843, %v841
    // Predicated region
    $region30: #{raw_widar3_forward.5} parent=1 // pred_check
      _
    $region31: #{raw_widar3_forward.5} parent=1 // pred_check_branch
      %846 = sbr.rel (0) target = $region33
    $region32: #{raw_widar3_forward.5} parent=1 // pred_region
      %848 = vsyncadd [#allocation3], 0
      %s850 = sshll.u32 [#allocation2], 4
      %s851 = int_to_ptr.vmem [resolvable:$true] %s850
      %s852 = sshll.u32 %s7, 4
      %s853 = int_to_ptr.hbm [resolvable:$true] %s852
      %855 = dma.vmem_to_hbm [thread:$0]  %s851, 32, %s853, [#allocation3]
    $region33: #{raw_widar3_forward.5} parent=1 // pred_fallthru
      _
    // Predicated region
    $region34: #{raw_widar3_forward.5} parent=1 // pred_check
      _
    $region35: #{raw_widar3_forward.5} parent=1 // pred_check_branch
      %857 = sbr.rel (0) target = $region37
    $region36: #{raw_widar3_forward.5} parent=1 // pred_region
      %859 = dma.done [#allocation3], 32
    $region37: #{raw_widar3_forward.5} parent=1 // pred_fallthru
      _
    %860 = vsyncpa [#allocation3], 1

</llo_original>
